<compile_context>
chip_gen: v7x
topology: tpu7x:2x2x1
jax: 0.10.0
libtpu: 0.0.40
codegen_flags: <defaults>
</compile_context>

<pallas_src>
import math

import jax
import jax.numpy as jnp
from jax.experimental import pallas as pl
from jax.experimental.pallas import tpu as pltpu

# Matmul operand dtype (accumulation is always f32 via preferred_element_type).
_MATMUL_DTYPE = jnp.bfloat16


# ----------------------------------------------------------------------------
# Kernel
# ----------------------------------------------------------------------------
def _gilr_lstm_kernel(x_ref, w_in_ref, b_in_ref, w_mid_ref, b_mid_ref,
                      w_out_ref, b_out_ref,
                      out_ref, hid_ref,
                      v_s, f_s, g_s, h1_ref, h2_ref):
    # x_ref: (Tc, TB, Din) time-major chunk (f32, Din = native input dim).
    Tc, TB, Din = x_ref.shape
    D = w_out_ref.shape[0]          # lane-padded model dim (multiple of 128)
    unroll = min(8, Tc)

    c = pl.program_id(1)
    last_c = pl.num_programs(1) - 1

    # Reset the recurrent carries at the first time chunk of each batch tile.
    @pl.when(c == 0)
    def _():
        h1_ref[...] = jnp.zeros_like(h1_ref)
        h2_ref[...] = jnp.zeros_like(h2_ref)

    # --- fused in_proj (ensemble=2 folded into one (Din, 2D) bf16 matmul) ----
    x2d = x_ref[...].reshape(Tc * TB, Din).astype(w_in_ref.dtype)
    u = jnp.dot(x2d, w_in_ref[...], preferred_element_type=jnp.float32)
    u = u + b_in_ref[...]
    v_s[...] = jnp.tanh(u[:, :D]).reshape(Tc, TB, D)
    f_s[...] = jax.nn.sigmoid(u[:, D:]).reshape(Tc, TB, D)

    # --- first GILR scan (tied input gate), carry persists across chunks ----
    def scan1(t, h):
        ft = f_s[t]
        h = ft * h + (1.0 - ft) * v_s[t]
        v_s[t] = h
        return h

    h1 = jax.lax.fori_loop(0, Tc, scan1, h1_ref[...], unroll=unroll)
    h1_ref[...] = h1

    # --- fused middle_proj (ensemble=4 folded into one (D, 4D) bf16 matmul) --
    s1 = v_s[...].reshape(Tc * TB, D).astype(w_mid_ref.dtype)
    u = jnp.dot(s1, w_mid_ref[...], preferred_element_type=jnp.float32)
    u = u + b_mid_ref[...]
    f_s[...] = jax.nn.sigmoid(u[:, :D]).reshape(Tc, TB, D)             # f2
    g_s[...] = (jax.nn.sigmoid(u[:, D:2 * D]) *
                jnp.tanh(u[:, 3 * D:])).reshape(Tc, TB, D)             # i*z
    v_s[...] = jax.nn.sigmoid(u[:, 2 * D:3 * D]).reshape(Tc, TB, D)    # o

    # --- second GILR scan, carry persists across chunks ----------------------
    def scan2(t, h):
        ft = f_s[t]
        h = ft * h + (1.0 - ft) * g_s[t]
        g_s[t] = h
        return h

    h2 = jax.lax.fori_loop(0, Tc, scan2, h2_ref[...], unroll=unroll)
    h2_ref[...] = h2

    # --- output gate + out_proj ----------------------------------------------
    gated = (g_s[...] * v_s[...]).reshape(Tc * TB, D).astype(w_out_ref.dtype)
    out = jnp.dot(gated, w_out_ref[...], preferred_element_type=jnp.float32)
    out_ref[...] = (out + b_out_ref[...]).reshape(Tc, TB, D)

    # Final hidden state only matters after the last time chunk.
    @pl.when(c == last_c)
    def _():
        hid_ref[:, :D] = h1
        hid_ref[:, D:] = h2


# ----------------------------------------------------------------------------
# Capability / hardware helpers
# ----------------------------------------------------------------------------
_WEIGHT_PIPELINE_MODE = None
_WEIGHT_PIPELINE_PROBED = False


def _weight_pipeline_mode():
    """Probe once whether pl.Buffered(1) (single-buffered inputs) is supported."""
    global _WEIGHT_PIPELINE_MODE, _WEIGHT_PIPELINE_PROBED
    if _WEIGHT_PIPELINE_PROBED:
        return _WEIGHT_PIPELINE_MODE
    _WEIGHT_PIPELINE_PROBED = True
    try:
        mode = pl.Buffered(1)

        def probe_kernel(w_ref, x_ref, o_ref):
            o_ref[...] = x_ref[...] + w_ref[...]

        with jax.ensure_compile_time_eval():
            w = jnp.ones((8, 128), jnp.float32)
            x = jnp.ones((16, 8, 128), jnp.float32)
            out = pl.pallas_call(
                probe_kernel,
                out_shape=jax.ShapeDtypeStruct((16, 8, 128), jnp.float32),
                grid=(2, 2),
                in_specs=[
                    pl.BlockSpec((8, 128), lambda i, c: (0, 0),
                                 pipeline_mode=mode),
                    pl.BlockSpec((4, 8, 128), lambda i, c: (i * 2 + c, 0, 0)),
                ],
                out_specs=pl.BlockSpec((4, 8, 128),
                                       lambda i, c: (i * 2 + c, 0, 0)),
                compiler_params=pltpu.CompilerParams(
                    dimension_semantics=("parallel", "arbitrary")),
            )(w, x)
            jax.block_until_ready(out)
        _WEIGHT_PIPELINE_MODE = mode
    except Exception:
        _WEIGHT_PIPELINE_MODE = None
    return _WEIGHT_PIPELINE_MODE


def _vmem_capacity_bytes():
    try:
        return int(pltpu.get_tpu_info().vmem_capacity_bytes)
    except Exception:
        return 64 << 20        # conservative: v7x per-TensorCore VMEM


def _round_up(x, m):
    return ((x + m - 1) // m) * m


# Per (time, batch-row) resident bytes at the kernel's peak (middle_proj):
#   x block f32 x2 buffers + out block f32 x2 buffers + 3 f32 scratch
#   + fused matmul output / gate temporaries (~6 x D f32).
def _bytes_per_row(Din, D_p):
    return 8 * Din + 44 * D_p


def _fixed_bytes(TB, D_p):
    # h1/h2 carries + double-buffered hidden output block.
    return 2 * TB * D_p * 4 + 2 * TB * 2 * D_p * 4


def _choose_time_chunk(T, TB, Din, D_p, weight_bytes, vmem_cap, target_rows):
    budget = int(0.70 * vmem_cap) - weight_bytes - _fixed_bytes(TB, D_p)
    rows_cap = max(TB, budget // _bytes_per_row(Din, D_p))
    rows = max(TB, min(rows_cap, max(target_rows, TB)))
    tc = max(1, min(T, rows // TB))
    while T % tc:              # snap down to a divisor of T
        tc -= 1
    return tc


def _vmem_limit_bytes(tc, TB, Din, D_p, weight_bytes, vmem_cap):
    est = (weight_bytes + tc * TB * _bytes_per_row(Din, D_p)
           + _fixed_bytes(TB, D_p))
    return max(32 << 20, min(int(est * 1.5) + (4 << 20), int(vmem_cap * 0.9)))


def _prepare_params(params, D_p, matmul_dtype):
    """Lane-pad the model dim, fuse ensemble weights, cast weights to bf16."""
    D = params["w_out"].shape[0]
    pad = D_p - D
    w_in = jnp.pad(params["w_in"], ((0, 0), (0, 0), (0, pad)))
    b_in = jnp.pad(params["b_in"], ((0, 0), (0, 0), (0, pad)))
    w_mid = jnp.pad(params["w_mid"], ((0, 0), (0, pad), (0, pad)))
    b_mid = jnp.pad(params["b_mid"], ((0, 0), (0, 0), (0, pad)))
    w_out = jnp.pad(params["w_out"], ((0, pad), (0, pad)))
    b_out = jnp.pad(params["b_out"], ((0, 0), (0, pad)))

    w_in_f = jnp.concatenate([w_in[0], w_in[1]], axis=1).astype(matmul_dtype)
    b_in_f = jnp.concatenate([b_in[0], b_in[1]], axis=1)
    w_mid_f = jnp.concatenate([w_mid[0], w_mid[1], w_mid[2], w_mid[3]],
                              axis=1).astype(matmul_dtype)
    b_mid_f = jnp.concatenate([b_mid[0], b_mid[1], b_mid[2], b_mid[3]], axis=1)
    return w_in_f, b_in_f, w_mid_f, b_mid_f, w_out.astype(matmul_dtype), b_out


# ----------------------------------------------------------------------------
# Wrapper
# ----------------------------------------------------------------------------
def gilr_lstm_forward(x, params, *, batch_block=32, min_batch_tiles=2,
                      target_chunk_rows=512):
    """x: (B, T, input_dim) batch-first. Returns (out (B,T,D), hidden (1,B,2D)).

    batch_block:      target batch rows per tile (rounded to sublane multiple).
    min_batch_tiles:  minimum batch tiles so the 'parallel' axis shards across
                      v7x's two TensorCores (free on 1-TC chips when B > 8).
    target_chunk_rows: target Tc*TB rows per MXU call (>=256 for v6e/v7x,
                      128 is enough for v5e's 128-wide MXU).
    """
    B, T, Din = x.shape
    D = params["w_out"].shape[0]
    D_p = _round_up(D, 128)

    # --- batch tiling ---------------------------------------------------------
    B_p0 = _round_up(B, 8)
    tb_cap = min(_round_up(batch_block, 8), B_p0)
    n_tiles = max(min_batch_tiles, pl.cdiv(B_p0, tb_cap))
    TB = _round_up(pl.cdiv(B_p0, n_tiles), 8)
    B_p = TB * n_tiles

    # --- time chunking & VMEM sizing ------------------------------------------
    wmode = _weight_pipeline_mode()
    wbuf = 1 if wmode is not None else 2
    weight_bytes = wbuf * (2 * (Din * 2 * D_p + D_p * 4 * D_p + D_p * D_p)
                           + 4 * (2 * D_p + 4 * D_p + D_p))
    vmem_cap = _vmem_capacity_bytes()
    Tc = _choose_time_chunk(T, TB, Din, D_p, weight_bytes, vmem_cap,
                            target_chunk_rows)
    n_chunks = T // Tc

    # Time-major x, batch padded; input_dim left at its native size (no 128-pad,
    # the x BlockSpec uses the full last dim).
    xt = jnp.pad(jnp.transpose(x, (1, 0, 2)), ((0, 0), (0, B_p - B), (0, 0)))

    w_in_f, b_in_f, w_mid_f, b_mid_f, w_out_p, b_out_p = _prepare_params(
        params, D_p, _MATMUL_DTYPE)

    def wspec(shape):
        idx = lambda i, c: (0,) * len(shape)          # grid-invariant
        if wmode is None:
            return pl.BlockSpec(shape, idx)
        return pl.BlockSpec(shape, idx, pipeline_mode=wmode)

    out_t, hid = pl.pallas_call(
        _gilr_lstm_kernel,
        out_shape=(jax.ShapeDtypeStruct((T, B_p, D_p), jnp.float32),
                   jax.ShapeDtypeStruct((B_p, 2 * D_p), jnp.float32)),
        grid=(n_tiles, n_chunks),
        in_specs=[
            pl.BlockSpec((Tc, TB, Din), lambda i, c: (c, i, 0)),      # x
            wspec((Din, 2 * D_p)),                                     # in_proj W
            wspec((1, 2 * D_p)),                                       # in_proj b
            wspec((D_p, 4 * D_p)),                                     # middle W
            wspec((1, 4 * D_p)),                                       # middle b
            wspec((D_p, D_p)),                                         # out_proj W
            wspec((1, D_p)),                                           # out_proj b
        ],
        out_specs=(
            pl.BlockSpec((Tc, TB, D_p), lambda i, c: (c, i, 0)),
            pl.BlockSpec((TB, 2 * D_p), lambda i, c: (i, 0)),
        ),
        scratch_shapes=[
            pltpu.VMEM((Tc, TB, D_p), jnp.float32),    # v_s
            pltpu.VMEM((Tc, TB, D_p), jnp.float32),    # f_s
            pltpu.VMEM((Tc, TB, D_p), jnp.float32),    # g_s
            pltpu.VMEM((TB, D_p), jnp.float32),        # h1 carry
            pltpu.VMEM((TB, D_p), jnp.float32),        # h2 carry
        ],
        compiler_params=pltpu.CompilerParams(
            dimension_semantics=("parallel", "arbitrary"),
            vmem_limit_bytes=_vmem_limit_bytes(Tc, TB, Din, D_p, weight_bytes,
                                               vmem_cap)),
    )(xt, w_in_f, b_in_f, w_mid_f, b_mid_f, w_out_p, b_out_p)

    out = jnp.transpose(out_t, (1, 0, 2))[:B, :, :D]                   # batch-first
    hidden = jnp.concatenate([hid[:B, :D], hid[:B, D_p:D_p + D]],
                             axis=-1)[None, :, :]                      # (1, B, 2D)
    return out, hidden


# ----------------------------------------------------------------------------
# Test harness
# ----------------------------------------------------------------------------
def init_params(key, input_dim, d_model, factor=1):
    D = d_model * factor
    ks = jax.random.split(key, 6)
    b_in = 1.0 / math.sqrt(input_dim)
    b_d = 1.0 / math.sqrt(D)
    return {
        "w_in": jax.random.uniform(ks[0], (2, input_dim, D), jnp.float32, -b_in, b_in),
        "b_in": jax.random.uniform(ks[1], (2, 1, D), jnp.float32, -b_in, b_in),
        "w_mid": jax.random.uniform(ks[2], (4, D, D), jnp.float32, -b_d, b_d),
        "b_mid": jax.random.uniform(ks[3], (4, 1, D), jnp.float32, -b_d, b_d),
        "w_out": jax.random.uniform(ks[4], (D, D), jnp.float32, -b_d, b_d),
        "b_out": jax.random.uniform(ks[5], (1, D), jnp.float32, -b_d, b_d),
    }


def _reference_forward(x, p, *, matmul_dtype=jnp.float32,
                       precision=jax.lax.Precision.HIGHEST):
    """Pure-JAX reference replicating the PyTorch forward (hidden=None path)."""
    def mm(a, w, b):
        return jnp.dot(a.astype(matmul_dtype), w.astype(matmul_dtype),
                       preferred_element_type=jnp.float32,
                       precision=precision) + b

    def tied_scan(v, f):
        def step(h, vf):
            vt, ft = vf
            h = ft * h + (1.0 - ft) * vt
            return h, h
        h0 = jnp.zeros((v.shape[0], v.shape[-1]), jnp.float32)
        hlast, ys = jax.lax.scan(step, h0,
                                 (jnp.swapaxes(v, 0, 1), jnp.swapaxes(f, 0, 1)))
        return jnp.swapaxes(ys, 0, 1), hlast

    v = jnp.tanh(mm(x, p["w_in"][0], p["b_in"][0]))
    f = jax.nn.sigmoid(mm(x, p["w_in"][1], p["b_in"][1]))
    v, h_pre = tied_scan(v, f)

    f2 = jax.nn.sigmoid(mm(v, p["w_mid"][0], p["b_mid"][0]))
    i = jax.nn.sigmoid(mm(v, p["w_mid"][1], p["b_mid"][1]))
    o = jax.nn.sigmoid(mm(v, p["w_mid"][2], p["b_mid"][2]))
    z = jnp.tanh(mm(v, p["w_mid"][3], p["b_mid"][3]))
    out, h_mid = tied_scan(i * z, f2)

    out = mm(out * o, p["w_out"], p["b_out"])
    hidden = jnp.concatenate([h_pre, h_mid], axis=-1)[None, :, :]
    return out, hidden


if __name__ == "__main__":
    B, T, input_dim, d_model = 2, 8, 16, 32

    key = jax.random.PRNGKey(0)
    k_x, k_p = jax.random.split(key)
    x = jax.random.normal(k_x, (B, T, input_dim), jnp.float32)
    params = init_params(k_p, input_dim, d_model)

    out, hidden = jax.jit(gilr_lstm_forward)(x, params)
    out = jax.block_until_ready(out)
    hidden = jax.block_until_ready(hidden)

    assert out.shape == (B, T, d_model)
    assert hidden.shape == (1, B, 2 * d_model)

    # Structural check: reference evaluated at the same (bf16 operand) matmul
    # precision as the kernel -> should match tightly.
    ref_out, ref_hid = _reference_forward(
        x, params, matmul_dtype=_MATMUL_DTYPE,
        precision=jax.lax.Precision.DEFAULT)
    assert jnp.allclose(out, ref_out, rtol=1e-4, atol=1e-4)
    assert jnp.allclose(hidden, ref_hid, rtol=1e-4, atol=1e-4)

    # Fidelity sanity check vs full-f32 reference (bf16 MXU operands give
    # ~1e-3 absolute differences at these magnitudes).
    ref_out32, ref_hid32 = _reference_forward(x, params)
    assert jnp.allclose(out, ref_out32, rtol=3e-2, atol=3e-2)
    assert jnp.allclose(hidden, ref_hid32, rtol=3e-2, atol=3e-2)

    print("KERNEL_OK")
</pallas_src>

<mosaic_0001>
module attributes {stable_mosaic.version = 11 : i64} {
  func.func @_gilr_lstm_kernel(%arg0: i32, %arg1: i32, %arg2: memref<8x8x16xf32, #tpu.memory_space<vmem>>, %arg3: memref<16x256xbf16, #tpu.memory_space<vmem>>, %arg4: memref<1x256xf32, #tpu.memory_space<vmem>>, %arg5: memref<128x512xbf16, #tpu.memory_space<vmem>>, %arg6: memref<1x512xf32, #tpu.memory_space<vmem>>, %arg7: memref<128x128xbf16, #tpu.memory_space<vmem>>, %arg8: memref<1x128xf32, #tpu.memory_space<vmem>>, %arg9: memref<8x8x128xf32, #tpu.memory_space<vmem>>, %arg10: memref<8x256xf32, #tpu.memory_space<vmem>>, %arg11: memref<8x8x128xf32, #tpu.memory_space<vmem>>, %arg12: memref<8x8x128xf32, #tpu.memory_space<vmem>>, %arg13: memref<8x8x128xf32, #tpu.memory_space<vmem>>, %arg14: memref<8x128xf32, #tpu.memory_space<vmem>>, %arg15: memref<8x128xf32, #tpu.memory_space<vmem>>) attributes {dimension_semantics = [#tpu.dimension_semantics<parallel>, #tpu.dimension_semantics<arbitrary>], iteration_bounds = array<i64: 2, 1>, scalar_prefetch = 0 : i64, scratch_operands = 5 : i64, tpu.core_type = #tpu.core_type<tc>, window_params = [{transform_indices = @transform_0, window_bounds = array<i64: 8, 8, 16>}, {pipeline_mode = #tpu.pipeline_mode<synchronous>, transform_indices = @transform_1, window_bounds = array<i64: 16, 256>}, {pipeline_mode = #tpu.pipeline_mode<synchronous>, transform_indices = @transform_2, window_bounds = array<i64: 1, 256>}, {pipeline_mode = #tpu.pipeline_mode<synchronous>, transform_indices = @transform_3, window_bounds = array<i64: 128, 512>}, {pipeline_mode = #tpu.pipeline_mode<synchronous>, transform_indices = @transform_4, window_bounds = array<i64: 1, 512>}, {pipeline_mode = #tpu.pipeline_mode<synchronous>, transform_indices = @transform_5, window_bounds = array<i64: 128, 128>}, {pipeline_mode = #tpu.pipeline_mode<synchronous>, transform_indices = @transform_6, window_bounds = array<i64: 1, 128>}, {transform_indices = @transform_7, window_bounds = array<i64: 8, 8, 128>}, {transform_indices = @transform_8, window_bounds = array<i64: 8, 256>}]} {
    %c0_i32 = arith.constant 0 : i32
    %0 = arith.cmpi eq, %arg1, %c0_i32 : i32
    %1 = arith.extui %0 : i1 to i32
    %c0_i32_0 = arith.constant 0 : i32
    %2 = arith.cmpi ne, %1, %c0_i32_0 : i32
    scf.if %2 {
      %cst_180 = arith.constant 0.000000e+00 : f32
      %317 = vector.broadcast %cst_180 : f32 to vector<8x128xf32>
      %c0_181 = arith.constant 0 : index
      %c0_182 = arith.constant 0 : index
      %318 = vector.load %arg14[%c0_181, %c0_182] : memref<8x128xf32, #tpu.memory_space<vmem>>, vector<8x128xf32>
      tpu.vector_store %arg14[%c0_181, %c0_182], %317 {strides = array<i32>} : memref<8x128xf32, #tpu.memory_space<vmem>>, vector<8x128xf32>,
      %cst_183 = arith.constant 0.000000e+00 : f32
      %319 = vector.broadcast %cst_183 : f32 to vector<8x128xf32>
      %c0_184 = arith.constant 0 : index
      %c0_185 = arith.constant 0 : index
      %320 = vector.load %arg15[%c0_184, %c0_185] : memref<8x128xf32, #tpu.memory_space<vmem>>, vector<8x128xf32>
      tpu.vector_store %arg15[%c0_184, %c0_185], %319 {strides = array<i32>} : memref<8x128xf32, #tpu.memory_space<vmem>>, vector<8x128xf32>,
    } else {
    }
    %c0 = arith.constant 0 : index
    %c0_1 = arith.constant 0 : index
    %c0_2 = arith.constant 0 : index
    %3 = vector.load %arg2[%c0, %c0_1, %c0_2] : memref<8x8x16xf32, #tpu.memory_space<vmem>>, vector<8x8x16xf32>
    %4 = vector.shape_cast %3 : vector<8x8x16xf32> to vector<64x16xf32>
    %5 = arith.truncf %4 : vector<64x16xf32> to vector<64x16xbf16>
    %c0_3 = arith.constant 0 : index
    %c0_4 = arith.constant 0 : index
    %6 = vector.load %arg3[%c0_3, %c0_4] : memref<16x256xbf16, #tpu.memory_space<vmem>>, vector<16x256xbf16>
    %cst = arith.constant dense<0.000000e+00> : vector<64x256xf32>
    %7 = tpu.matmul %5, %6, %cst {dimension_numbers = #tpu.dot_dimension_numbers<[1], [0], [0], [1], [0, 0, 1, 1], [], []>} : vector<64x16xbf16>, vector<16x256xbf16>, vector<64x256xf32> -> vector<64x256xf32>
    %c0_5 = arith.constant 0 : index
    %c0_6 = arith.constant 0 : index
    %8 = vector.load %arg4[%c0_5, %c0_6] : memref<1x256xf32, #tpu.memory_space<vmem>>, vector<1x256xf32>
    %9 = vector.broadcast %8 : vector<1x256xf32> to vector<64x256xf32>
    %10 = arith.addf %7, %9 : vector<64x256xf32>
    %11 = vector.extract_strided_slice %10 {offsets = [0, 0], sizes = [64, 128], strides = [1, 1]} : vector<64x256xf32> to vector<64x128xf32>
    %12 = math.tanh %11 : vector<64x128xf32>
    %13 = vector.shape_cast %12 : vector<64x128xf32> to vector<8x8x128xf32>
    %c0_7 = arith.constant 0 : index
    %c0_8 = arith.constant 0 : index
    %c0_9 = arith.constant 0 : index
    %14 = vector.load %arg11[%c0_7, %c0_8, %c0_9] : memref<8x8x128xf32, #tpu.memory_space<vmem>>, vector<8x8x128xf32>
    tpu.vector_store %arg11[%c0_7, %c0_8, %c0_9], %13 {strides = array<i32>} : memref<8x8x128xf32, #tpu.memory_space<vmem>>, vector<8x8x128xf32>,
    %15 = vector.extract_strided_slice %10 {offsets = [0, 128], sizes = [64, 128], strides = [1, 1]} : vector<64x256xf32> to vector<64x128xf32>
    %16 = arith.negf %15 : vector<64x128xf32>
    %17 = math.exp %16 : vector<64x128xf32>
    %cst_10 = arith.constant 1.000000e+00 : f32
    %18 = vector.broadcast %cst_10 : f32 to vector<64x128xf32>
    %19 = arith.addf %18, %17 : vector<64x128xf32>
    %20 = arith.divf %18, %19 : vector<64x128xf32>
    %21 = vector.shape_cast %20 : vector<64x128xf32> to vector<8x8x128xf32>
    %c0_11 = arith.constant 0 : index
    %c0_12 = arith.constant 0 : index
    %c0_13 = arith.constant 0 : index
    %22 = vector.load %arg12[%c0_11, %c0_12, %c0_13] : memref<8x8x128xf32, #tpu.memory_space<vmem>>, vector<8x8x128xf32>
    tpu.vector_store %arg12[%c0_11, %c0_12, %c0_13], %21 {strides = array<i32>} : memref<8x8x128xf32, #tpu.memory_space<vmem>>, vector<8x8x128xf32>,
    %c0_14 = arith.constant 0 : index
    %c0_15 = arith.constant 0 : index
    %23 = vector.load %arg14[%c0_14, %c0_15] : memref<8x128xf32, #tpu.memory_space<vmem>>, vector<8x128xf32>
    %c0_i32_16 = arith.constant 0 : i32
    %24 = arith.index_cast %c0_i32_16 : i32 to index
    %c0_17 = arith.constant 0 : index
    %c0_18 = arith.constant 0 : index
    %25 = vector.load %arg12[%24, %c0_17, %c0_18] : memref<8x8x128xf32, #tpu.memory_space<vmem>>, vector<1x8x128xf32>
    %26 = vector.shape_cast %25 : vector<1x8x128xf32> to vector<8x128xf32>
    %27 = arith.mulf %26, %23 : vector<8x128xf32>
    %cst_19 = arith.constant 1.000000e+00 : f32
    %28 = vector.broadcast %cst_19 : f32 to vector<8x128xf32>
    %29 = arith.subf %28, %26 : vector<8x128xf32>
    %30 = arith.index_cast %c0_i32_16 : i32 to index
    %c0_20 = arith.constant 0 : index
    %c0_21 = arith.constant 0 : index
    %31 = vector.load %arg11[%30, %c0_20, %c0_21] : memref<8x8x128xf32, #tpu.memory_space<vmem>>, vector<1x8x128xf32>
    %32 = vector.shape_cast %31 : vector<1x8x128xf32> to vector<8x128xf32>
    %33 = arith.mulf %29, %32 : vector<8x128xf32>
    %34 = arith.addf %27, %33 : vector<8x128xf32>
    %35 = arith.index_cast %c0_i32_16 : i32 to index
    %c0_22 = arith.constant 0 : index
    %c0_23 = arith.constant 0 : index
    %36 = vector.load %arg11[%35, %c0_22, %c0_23] : memref<8x8x128xf32, #tpu.memory_space<vmem>>, vector<1x8x128xf32>
    %37 = vector.shape_cast %36 : vector<1x8x128xf32> to vector<8x128xf32>
    %38 = vector.shape_cast %34 : vector<8x128xf32> to vector<1x8x128xf32>
    tpu.vector_store %arg11[%35, %c0_22, %c0_23], %38 {strides = array<i32>} : memref<8x8x128xf32, #tpu.memory_space<vmem>>, vector<1x8x128xf32>,
    %c1_i32 = arith.constant 1 : i32
    %39 = arith.index_cast %c1_i32 : i32 to index
    %c0_24 = arith.constant 0 : index
    %c0_25 = arith.constant 0 : index
    %40 = vector.load %arg12[%39, %c0_24, %c0_25] : memref<8x8x128xf32, #tpu.memory_space<vmem>>, vector<1x8x128xf32>
    %41 = vector.shape_cast %40 : vector<1x8x128xf32> to vector<8x128xf32>
    %42 = arith.mulf %41, %34 : vector<8x128xf32>
    %cst_26 = arith.constant 1.000000e+00 : f32
    %43 = vector.broadcast %cst_26 : f32 to vector<8x128xf32>
    %44 = arith.subf %43, %41 : vector<8x128xf32>
    %45 = arith.index_cast %c1_i32 : i32 to index
    %c0_27 = arith.constant 0 : index
    %c0_28 = arith.constant 0 : index
    %46 = vector.load %arg11[%45, %c0_27, %c0_28] : memref<8x8x128xf32, #tpu.memory_space<vmem>>, vector<1x8x128xf32>
    %47 = vector.shape_cast %46 : vector<1x8x128xf32> to vector<8x128xf32>
    %48 = arith.mulf %44, %47 : vector<8x128xf32>
    %49 = arith.addf %42, %48 : vector<8x128xf32>
    %50 = arith.index_cast %c1_i32 : i32 to index
    %c0_29 = arith.constant 0 : index
    %c0_30 = arith.constant 0 : index
    %51 = vector.load %arg11[%50, %c0_29, %c0_30] : memref<8x8x128xf32, #tpu.memory_space<vmem>>, vector<1x8x128xf32>
    %52 = vector.shape_cast %51 : vector<1x8x128xf32> to vector<8x128xf32>
    %53 = vector.shape_cast %49 : vector<8x128xf32> to vector<1x8x128xf32>
    tpu.vector_store %arg11[%50, %c0_29, %c0_30], %53 {strides = array<i32>} : memref<8x8x128xf32, #tpu.memory_space<vmem>>, vector<1x8x128xf32>,
    %c2_i32 = arith.constant 2 : i32
    %54 = arith.index_cast %c2_i32 : i32 to index
    %c0_31 = arith.constant 0 : index
    %c0_32 = arith.constant 0 : index
    %55 = vector.load %arg12[%54, %c0_31, %c0_32] : memref<8x8x128xf32, #tpu.memory_space<vmem>>, vector<1x8x128xf32>
    %56 = vector.shape_cast %55 : vector<1x8x128xf32> to vector<8x128xf32>
    %57 = arith.mulf %56, %49 : vector<8x128xf32>
    %cst_33 = arith.constant 1.000000e+00 : f32
    %58 = vector.broadcast %cst_33 : f32 to vector<8x128xf32>
    %59 = arith.subf %58, %56 : vector<8x128xf32>
    %60 = arith.index_cast %c2_i32 : i32 to index
    %c0_34 = arith.constant 0 : index
    %c0_35 = arith.constant 0 : index
    %61 = vector.load %arg11[%60, %c0_34, %c0_35] : memref<8x8x128xf32, #tpu.memory_space<vmem>>, vector<1x8x128xf32>
    %62 = vector.shape_cast %61 : vector<1x8x128xf32> to vector<8x128xf32>
    %63 = arith.mulf %59, %62 : vector<8x128xf32>
    %64 = arith.addf %57, %63 : vector<8x128xf32>
    %65 = arith.index_cast %c2_i32 : i32 to index
    %c0_36 = arith.constant 0 : index
    %c0_37 = arith.constant 0 : index
    %66 = vector.load %arg11[%65, %c0_36, %c0_37] : memref<8x8x128xf32, #tpu.memory_space<vmem>>, vector<1x8x128xf32>
    %67 = vector.shape_cast %66 : vector<1x8x128xf32> to vector<8x128xf32>
    %68 = vector.shape_cast %64 : vector<8x128xf32> to vector<1x8x128xf32>
    tpu.vector_store %arg11[%65, %c0_36, %c0_37], %68 {strides = array<i32>} : memref<8x8x128xf32, #tpu.memory_space<vmem>>, vector<1x8x128xf32>,
    %c3_i32 = arith.constant 3 : i32
    %69 = arith.index_cast %c3_i32 : i32 to index
    %c0_38 = arith.constant 0 : index
    %c0_39 = arith.constant 0 : index
    %70 = vector.load %arg12[%69, %c0_38, %c0_39] : memref<8x8x128xf32, #tpu.memory_space<vmem>>, vector<1x8x128xf32>
    %71 = vector.shape_cast %70 : vector<1x8x128xf32> to vector<8x128xf32>
    %72 = arith.mulf %71, %64 : vector<8x128xf32>
    %cst_40 = arith.constant 1.000000e+00 : f32
    %73 = vector.broadcast %cst_40 : f32 to vector<8x128xf32>
    %74 = arith.subf %73, %71 : vector<8x128xf32>
    %75 = arith.index_cast %c3_i32 : i32 to index
    %c0_41 = arith.constant 0 : index
    %c0_42 = arith.constant 0 : index
    %76 = vector.load %arg11[%75, %c0_41, %c0_42] : memref<8x8x128xf32, #tpu.memory_space<vmem>>, vector<1x8x128xf32>
    %77 = vector.shape_cast %76 : vector<1x8x128xf32> to vector<8x128xf32>
    %78 = arith.mulf %74, %77 : vector<8x128xf32>
    %79 = arith.addf %72, %78 : vector<8x128xf32>
    %80 = arith.index_cast %c3_i32 : i32 to index
    %c0_43 = arith.constant 0 : index
    %c0_44 = arith.constant 0 : index
    %81 = vector.load %arg11[%80, %c0_43, %c0_44] : memref<8x8x128xf32, #tpu.memory_space<vmem>>, vector<1x8x128xf32>
    %82 = vector.shape_cast %81 : vector<1x8x128xf32> to vector<8x128xf32>
    %83 = vector.shape_cast %79 : vector<8x128xf32> to vector<1x8x128xf32>
    tpu.vector_store %arg11[%80, %c0_43, %c0_44], %83 {strides = array<i32>} : memref<8x8x128xf32, #tpu.memory_space<vmem>>, vector<1x8x128xf32>,
    %c4_i32 = arith.constant 4 : i32
    %84 = arith.index_cast %c4_i32 : i32 to index
    %c0_45 = arith.constant 0 : index
    %c0_46 = arith.constant 0 : index
    %85 = vector.load %arg12[%84, %c0_45, %c0_46] : memref<8x8x128xf32, #tpu.memory_space<vmem>>, vector<1x8x128xf32>
    %86 = vector.shape_cast %85 : vector<1x8x128xf32> to vector<8x128xf32>
    %87 = arith.mulf %86, %79 : vector<8x128xf32>
    %cst_47 = arith.constant 1.000000e+00 : f32
    %88 = vector.broadcast %cst_47 : f32 to vector<8x128xf32>
    %89 = arith.subf %88, %86 : vector<8x128xf32>
    %90 = arith.index_cast %c4_i32 : i32 to index
    %c0_48 = arith.constant 0 : index
    %c0_49 = arith.constant 0 : index
    %91 = vector.load %arg11[%90, %c0_48, %c0_49] : memref<8x8x128xf32, #tpu.memory_space<vmem>>, vector<1x8x128xf32>
    %92 = vector.shape_cast %91 : vector<1x8x128xf32> to vector<8x128xf32>
    %93 = arith.mulf %89, %92 : vector<8x128xf32>
    %94 = arith.addf %87, %93 : vector<8x128xf32>
    %95 = arith.index_cast %c4_i32 : i32 to index
    %c0_50 = arith.constant 0 : index
    %c0_51 = arith.constant 0 : index
    %96 = vector.load %arg11[%95, %c0_50, %c0_51] : memref<8x8x128xf32, #tpu.memory_space<vmem>>, vector<1x8x128xf32>
    %97 = vector.shape_cast %96 : vector<1x8x128xf32> to vector<8x128xf32>
    %98 = vector.shape_cast %94 : vector<8x128xf32> to vector<1x8x128xf32>
    tpu.vector_store %arg11[%95, %c0_50, %c0_51], %98 {strides = array<i32>} : memref<8x8x128xf32, #tpu.memory_space<vmem>>, vector<1x8x128xf32>,
    %c5_i32 = arith.constant 5 : i32
    %99 = arith.index_cast %c5_i32 : i32 to index
    %c0_52 = arith.constant 0 : index
    %c0_53 = arith.constant 0 : index
    %100 = vector.load %arg12[%99, %c0_52, %c0_53] : memref<8x8x128xf32, #tpu.memory_space<vmem>>, vector<1x8x128xf32>
    %101 = vector.shape_cast %100 : vector<1x8x128xf32> to vector<8x128xf32>
    %102 = arith.mulf %101, %94 : vector<8x128xf32>
    %cst_54 = arith.constant 1.000000e+00 : f32
    %103 = vector.broadcast %cst_54 : f32 to vector<8x128xf32>
    %104 = arith.subf %103, %101 : vector<8x128xf32>
    %105 = arith.index_cast %c5_i32 : i32 to index
    %c0_55 = arith.constant 0 : index
    %c0_56 = arith.constant 0 : index
    %106 = vector.load %arg11[%105, %c0_55, %c0_56] : memref<8x8x128xf32, #tpu.memory_space<vmem>>, vector<1x8x128xf32>
    %107 = vector.shape_cast %106 : vector<1x8x128xf32> to vector<8x128xf32>
    %108 = arith.mulf %104, %107 : vector<8x128xf32>
    %109 = arith.addf %102, %108 : vector<8x128xf32>
    %110 = arith.index_cast %c5_i32 : i32 to index
    %c0_57 = arith.constant 0 : index
    %c0_58 = arith.constant 0 : index
    %111 = vector.load %arg11[%110, %c0_57, %c0_58] : memref<8x8x128xf32, #tpu.memory_space<vmem>>, vector<1x8x128xf32>
    %112 = vector.shape_cast %111 : vector<1x8x128xf32> to vector<8x128xf32>
    %113 = vector.shape_cast %109 : vector<8x128xf32> to vector<1x8x128xf32>
    tpu.vector_store %arg11[%110, %c0_57, %c0_58], %113 {strides = array<i32>} : memref<8x8x128xf32, #tpu.memory_space<vmem>>, vector<1x8x128xf32>,
    %c6_i32 = arith.constant 6 : i32
    %114 = arith.index_cast %c6_i32 : i32 to index
    %c0_59 = arith.constant 0 : index
    %c0_60 = arith.constant 0 : index
    %115 = vector.load %arg12[%114, %c0_59, %c0_60] : memref<8x8x128xf32, #tpu.memory_space<vmem>>, vector<1x8x128xf32>
    %116 = vector.shape_cast %115 : vector<1x8x128xf32> to vector<8x128xf32>
    %117 = arith.mulf %116, %109 : vector<8x128xf32>
    %cst_61 = arith.constant 1.000000e+00 : f32
    %118 = vector.broadcast %cst_61 : f32 to vector<8x128xf32>
    %119 = arith.subf %118, %116 : vector<8x128xf32>
    %120 = arith.index_cast %c6_i32 : i32 to index
    %c0_62 = arith.constant 0 : index
    %c0_63 = arith.constant 0 : index
    %121 = vector.load %arg11[%120, %c0_62, %c0_63] : memref<8x8x128xf32, #tpu.memory_space<vmem>>, vector<1x8x128xf32>
    %122 = vector.shape_cast %121 : vector<1x8x128xf32> to vector<8x128xf32>
    %123 = arith.mulf %119, %122 : vector<8x128xf32>
    %124 = arith.addf %117, %123 : vector<8x128xf32>
    %125 = arith.index_cast %c6_i32 : i32 to index
    %c0_64 = arith.constant 0 : index
    %c0_65 = arith.constant 0 : index
    %126 = vector.load %arg11[%125, %c0_64, %c0_65] : memref<8x8x128xf32, #tpu.memory_space<vmem>>, vector<1x8x128xf32>
    %127 = vector.shape_cast %126 : vector<1x8x128xf32> to vector<8x128xf32>
    %128 = vector.shape_cast %124 : vector<8x128xf32> to vector<1x8x128xf32>
    tpu.vector_store %arg11[%125, %c0_64, %c0_65], %128 {strides = array<i32>} : memref<8x8x128xf32, #tpu.memory_space<vmem>>, vector<1x8x128xf32>,
    %c7_i32 = arith.constant 7 : i32
    %129 = arith.index_cast %c7_i32 : i32 to index
    %c0_66 = arith.constant 0 : index
    %c0_67 = arith.constant 0 : index
    %130 = vector.load %arg12[%129, %c0_66, %c0_67] : memref<8x8x128xf32, #tpu.memory_space<vmem>>, vector<1x8x128xf32>
    %131 = vector.shape_cast %130 : vector<1x8x128xf32> to vector<8x128xf32>
    %132 = arith.mulf %131, %124 : vector<8x128xf32>
    %cst_68 = arith.constant 1.000000e+00 : f32
    %133 = vector.broadcast %cst_68 : f32 to vector<8x128xf32>
    %134 = arith.subf %133, %131 : vector<8x128xf32>
    %135 = arith.index_cast %c7_i32 : i32 to index
    %c0_69 = arith.constant 0 : index
    %c0_70 = arith.constant 0 : index
    %136 = vector.load %arg11[%135, %c0_69, %c0_70] : memref<8x8x128xf32, #tpu.memory_space<vmem>>, vector<1x8x128xf32>
    %137 = vector.shape_cast %136 : vector<1x8x128xf32> to vector<8x128xf32>
    %138 = arith.mulf %134, %137 : vector<8x128xf32>
    %139 = arith.addf %132, %138 : vector<8x128xf32>
    %140 = arith.index_cast %c7_i32 : i32 to index
    %c0_71 = arith.constant 0 : index
    %c0_72 = arith.constant 0 : index
    %141 = vector.load %arg11[%140, %c0_71, %c0_72] : memref<8x8x128xf32, #tpu.memory_space<vmem>>, vector<1x8x128xf32>
    %142 = vector.shape_cast %141 : vector<1x8x128xf32> to vector<8x128xf32>
    %143 = vector.shape_cast %139 : vector<8x128xf32> to vector<1x8x128xf32>
    tpu.vector_store %arg11[%140, %c0_71, %c0_72], %143 {strides = array<i32>} : memref<8x8x128xf32, #tpu.memory_space<vmem>>, vector<1x8x128xf32>,
    %c8_i32 = arith.constant 8 : i32
    %c0_73 = arith.constant 0 : index
    %c0_74 = arith.constant 0 : index
    %144 = vector.load %arg14[%c0_73, %c0_74] : memref<8x128xf32, #tpu.memory_space<vmem>>, vector<8x128xf32>
    tpu.vector_store %arg14[%c0_73, %c0_74], %139 {strides = array<i32>} : memref<8x128xf32, #tpu.memory_space<vmem>>, vector<8x128xf32>,
    %c0_75 = arith.constant 0 : index
    %c0_76 = arith.constant 0 : index
    %c0_77 = arith.constant 0 : index
    %145 = vector.load %arg11[%c0_75, %c0_76, %c0_77] : memref<8x8x128xf32, #tpu.memory_space<vmem>>, vector<8x8x128xf32>
    %146 = vector.shape_cast %145 : vector<8x8x128xf32> to vector<64x128xf32>
    %147 = arith.truncf %146 : vector<64x128xf32> to vector<64x128xbf16>
    %c0_78 = arith.constant 0 : index
    %c0_79 = arith.constant 0 : index
    %148 = vector.load %arg5[%c0_78, %c0_79] : memref<128x512xbf16, #tpu.memory_space<vmem>>, vector<128x512xbf16>
    %cst_80 = arith.constant dense<0.000000e+00> : vector<64x512xf32>
    %149 = tpu.matmul %147, %148, %cst_80 {dimension_numbers = #tpu.dot_dimension_numbers<[1], [0], [0], [1], [0, 0, 1, 1], [], []>} : vector<64x128xbf16>, vector<128x512xbf16>, vector<64x512xf32> -> vector<64x512xf32>
    %c0_81 = arith.constant 0 : index
    %c0_82 = arith.constant 0 : index
    %150 = vector.load %arg6[%c0_81, %c0_82] : memref<1x512xf32, #tpu.memory_space<vmem>>, vector<1x512xf32>
    %151 = vector.broadcast %150 : vector<1x512xf32> to vector<64x512xf32>
    %152 = arith.addf %149, %151 : vector<64x512xf32>
    %153 = vector.extract_strided_slice %152 {offsets = [0, 0], sizes = [64, 128], strides = [1, 1]} : vector<64x512xf32> to vector<64x128xf32>
    %154 = arith.negf %153 : vector<64x128xf32>
    %155 = math.exp %154 : vector<64x128xf32>
    %cst_83 = arith.constant 1.000000e+00 : f32
    %156 = vector.broadcast %cst_83 : f32 to vector<64x128xf32>
    %157 = arith.addf %156, %155 : vector<64x128xf32>
    %158 = arith.divf %156, %157 : vector<64x128xf32>
    %159 = vector.shape_cast %158 : vector<64x128xf32> to vector<8x8x128xf32>
    %c0_84 = arith.constant 0 : index
    %c0_85 = arith.constant 0 : index
    %c0_86 = arith.constant 0 : index
    %160 = vector.load %arg12[%c0_84, %c0_85, %c0_86] : memref<8x8x128xf32, #tpu.memory_space<vmem>>, vector<8x8x128xf32>
    tpu.vector_store %arg12[%c0_84, %c0_85, %c0_86], %159 {strides = array<i32>} : memref<8x8x128xf32, #tpu.memory_space<vmem>>, vector<8x8x128xf32>,
    %161 = vector.extract_strided_slice %152 {offsets = [0, 128], sizes = [64, 128], strides = [1, 1]} : vector<64x512xf32> to vector<64x128xf32>
    %162 = arith.negf %161 : vector<64x128xf32>
    %163 = math.exp %162 : vector<64x128xf32>
    %cst_87 = arith.constant 1.000000e+00 : f32
    %164 = vector.broadcast %cst_87 : f32 to vector<64x128xf32>
    %165 = arith.addf %164, %163 : vector<64x128xf32>
    %166 = arith.divf %164, %165 : vector<64x128xf32>
    %167 = vector.extract_strided_slice %152 {offsets = [0, 384], sizes = [64, 128], strides = [1, 1]} : vector<64x512xf32> to vector<64x128xf32>
    %168 = math.tanh %167 : vector<64x128xf32>
    %169 = arith.mulf %166, %168 : vector<64x128xf32>
    %170 = vector.shape_cast %169 : vector<64x128xf32> to vector<8x8x128xf32>
    %c0_88 = arith.constant 0 : index
    %c0_89 = arith.constant 0 : index
    %c0_90 = arith.constant 0 : index
    %171 = vector.load %arg13[%c0_88, %c0_89, %c0_90] : memref<8x8x128xf32, #tpu.memory_space<vmem>>, vector<8x8x128xf32>
    tpu.vector_store %arg13[%c0_88, %c0_89, %c0_90], %170 {strides = array<i32>} : memref<8x8x128xf32, #tpu.memory_space<vmem>>, vector<8x8x128xf32>,
    %172 = vector.extract_strided_slice %152 {offsets = [0, 256], sizes = [64, 128], strides = [1, 1]} : vector<64x512xf32> to vector<64x128xf32>
    %173 = arith.negf %172 : vector<64x128xf32>
    %174 = math.exp %173 : vector<64x128xf32>
    %cst_91 = arith.constant 1.000000e+00 : f32
    %175 = vector.broadcast %cst_91 : f32 to vector<64x128xf32>
    %176 = arith.addf %175, %174 : vector<64x128xf32>
    %177 = arith.divf %175, %176 : vector<64x128xf32>
    %178 = vector.shape_cast %177 : vector<64x128xf32> to vector<8x8x128xf32>
    %c0_92 = arith.constant 0 : index
    %c0_93 = arith.constant 0 : index
    %c0_94 = arith.constant 0 : index
    %179 = vector.load %arg11[%c0_92, %c0_93, %c0_94] : memref<8x8x128xf32, #tpu.memory_space<vmem>>, vector<8x8x128xf32>
    tpu.vector_store %arg11[%c0_92, %c0_93, %c0_94], %178 {strides = array<i32>} : memref<8x8x128xf32, #tpu.memory_space<vmem>>, vector<8x8x128xf32>,
    %c0_95 = arith.constant 0 : index
    %c0_96 = arith.constant 0 : index
    %180 = vector.load %arg15[%c0_95, %c0_96] : memref<8x128xf32, #tpu.memory_space<vmem>>, vector<8x128xf32>
    %c0_i32_97 = arith.constant 0 : i32
    %181 = arith.index_cast %c0_i32_97 : i32 to index
    %c0_98 = arith.constant 0 : index
    %c0_99 = arith.constant 0 : index
    %182 = vector.load %arg12[%181, %c0_98, %c0_99] : memref<8x8x128xf32, #tpu.memory_space<vmem>>, vector<1x8x128xf32>
    %183 = vector.shape_cast %182 : vector<1x8x128xf32> to vector<8x128xf32>
    %184 = arith.mulf %183, %180 : vector<8x128xf32>
    %cst_100 = arith.constant 1.000000e+00 : f32
    %185 = vector.broadcast %cst_100 : f32 to vector<8x128xf32>
    %186 = arith.subf %185, %183 : vector<8x128xf32>
    %187 = arith.index_cast %c0_i32_97 : i32 to index
    %c0_101 = arith.constant 0 : index
    %c0_102 = arith.constant 0 : index
    %188 = vector.load %arg13[%187, %c0_101, %c0_102] : memref<8x8x128xf32, #tpu.memory_space<vmem>>, vector<1x8x128xf32>
    %189 = vector.shape_cast %188 : vector<1x8x128xf32> to vector<8x128xf32>
    %190 = arith.mulf %186, %189 : vector<8x128xf32>
    %191 = arith.addf %184, %190 : vector<8x128xf32>
    %192 = arith.index_cast %c0_i32_97 : i32 to index
    %c0_103 = arith.constant 0 : index
    %c0_104 = arith.constant 0 : index
    %193 = vector.load %arg13[%192, %c0_103, %c0_104] : memref<8x8x128xf32, #tpu.memory_space<vmem>>, vector<1x8x128xf32>
    %194 = vector.shape_cast %193 : vector<1x8x128xf32> to vector<8x128xf32>
    %195 = vector.shape_cast %191 : vector<8x128xf32> to vector<1x8x128xf32>
    tpu.vector_store %arg13[%192, %c0_103, %c0_104], %195 {strides = array<i32>} : memref<8x8x128xf32, #tpu.memory_space<vmem>>, vector<1x8x128xf32>,
    %c1_i32_105 = arith.constant 1 : i32
    %196 = arith.index_cast %c1_i32_105 : i32 to index
    %c0_106 = arith.constant 0 : index
    %c0_107 = arith.constant 0 : index
    %197 = vector.load %arg12[%196, %c0_106, %c0_107] : memref<8x8x128xf32, #tpu.memory_space<vmem>>, vector<1x8x128xf32>
    %198 = vector.shape_cast %197 : vector<1x8x128xf32> to vector<8x128xf32>
    %199 = arith.mulf %198, %191 : vector<8x128xf32>
    %cst_108 = arith.constant 1.000000e+00 : f32
    %200 = vector.broadcast %cst_108 : f32 to vector<8x128xf32>
    %201 = arith.subf %200, %198 : vector<8x128xf32>
    %202 = arith.index_cast %c1_i32_105 : i32 to index
    %c0_109 = arith.constant 0 : index
    %c0_110 = arith.constant 0 : index
    %203 = vector.load %arg13[%202, %c0_109, %c0_110] : memref<8x8x128xf32, #tpu.memory_space<vmem>>, vector<1x8x128xf32>
    %204 = vector.shape_cast %203 : vector<1x8x128xf32> to vector<8x128xf32>
    %205 = arith.mulf %201, %204 : vector<8x128xf32>
    %206 = arith.addf %199, %205 : vector<8x128xf32>
    %207 = arith.index_cast %c1_i32_105 : i32 to index
    %c0_111 = arith.constant 0 : index
    %c0_112 = arith.constant 0 : index
    %208 = vector.load %arg13[%207, %c0_111, %c0_112] : memref<8x8x128xf32, #tpu.memory_space<vmem>>, vector<1x8x128xf32>
    %209 = vector.shape_cast %208 : vector<1x8x128xf32> to vector<8x128xf32>
    %210 = vector.shape_cast %206 : vector<8x128xf32> to vector<1x8x128xf32>
    tpu.vector_store %arg13[%207, %c0_111, %c0_112], %210 {strides = array<i32>} : memref<8x8x128xf32, #tpu.memory_space<vmem>>, vector<1x8x128xf32>,
    %c2_i32_113 = arith.constant 2 : i32
    %211 = arith.index_cast %c2_i32_113 : i32 to index
    %c0_114 = arith.constant 0 : index
    %c0_115 = arith.constant 0 : index
    %212 = vector.load %arg12[%211, %c0_114, %c0_115] : memref<8x8x128xf32, #tpu.memory_space<vmem>>, vector<1x8x128xf32>
    %213 = vector.shape_cast %212 : vector<1x8x128xf32> to vector<8x128xf32>
    %214 = arith.mulf %213, %206 : vector<8x128xf32>
    %cst_116 = arith.constant 1.000000e+00 : f32
    %215 = vector.broadcast %cst_116 : f32 to vector<8x128xf32>
    %216 = arith.subf %215, %213 : vector<8x128xf32>
    %217 = arith.index_cast %c2_i32_113 : i32 to index
    %c0_117 = arith.constant 0 : index
    %c0_118 = arith.constant 0 : index
    %218 = vector.load %arg13[%217, %c0_117, %c0_118] : memref<8x8x128xf32, #tpu.memory_space<vmem>>, vector<1x8x128xf32>
    %219 = vector.shape_cast %218 : vector<1x8x128xf32> to vector<8x128xf32>
    %220 = arith.mulf %216, %219 : vector<8x128xf32>
    %221 = arith.addf %214, %220 : vector<8x128xf32>
    %222 = arith.index_cast %c2_i32_113 : i32 to index
    %c0_119 = arith.constant 0 : index
    %c0_120 = arith.constant 0 : index
    %223 = vector.load %arg13[%222, %c0_119, %c0_120] : memref<8x8x128xf32, #tpu.memory_space<vmem>>, vector<1x8x128xf32>
    %224 = vector.shape_cast %223 : vector<1x8x128xf32> to vector<8x128xf32>
    %225 = vector.shape_cast %221 : vector<8x128xf32> to vector<1x8x128xf32>
    tpu.vector_store %arg13[%222, %c0_119, %c0_120], %225 {strides = array<i32>} : memref<8x8x128xf32, #tpu.memory_space<vmem>>, vector<1x8x128xf32>,
    %c3_i32_121 = arith.constant 3 : i32
    %226 = arith.index_cast %c3_i32_121 : i32 to index
    %c0_122 = arith.constant 0 : index
    %c0_123 = arith.constant 0 : index
    %227 = vector.load %arg12[%226, %c0_122, %c0_123] : memref<8x8x128xf32, #tpu.memory_space<vmem>>, vector<1x8x128xf32>
    %228 = vector.shape_cast %227 : vector<1x8x128xf32> to vector<8x128xf32>
    %229 = arith.mulf %228, %221 : vector<8x128xf32>
    %cst_124 = arith.constant 1.000000e+00 : f32
    %230 = vector.broadcast %cst_124 : f32 to vector<8x128xf32>
    %231 = arith.subf %230, %228 : vector<8x128xf32>
    %232 = arith.index_cast %c3_i32_121 : i32 to index
    %c0_125 = arith.constant 0 : index
    %c0_126 = arith.constant 0 : index
    %233 = vector.load %arg13[%232, %c0_125, %c0_126] : memref<8x8x128xf32, #tpu.memory_space<vmem>>, vector<1x8x128xf32>
    %234 = vector.shape_cast %233 : vector<1x8x128xf32> to vector<8x128xf32>
    %235 = arith.mulf %231, %234 : vector<8x128xf32>
    %236 = arith.addf %229, %235 : vector<8x128xf32>
    %237 = arith.index_cast %c3_i32_121 : i32 to index
    %c0_127 = arith.constant 0 : index
    %c0_128 = arith.constant 0 : index
    %238 = vector.load %arg13[%237, %c0_127, %c0_128] : memref<8x8x128xf32, #tpu.memory_space<vmem>>, vector<1x8x128xf32>
    %239 = vector.shape_cast %238 : vector<1x8x128xf32> to vector<8x128xf32>
    %240 = vector.shape_cast %236 : vector<8x128xf32> to vector<1x8x128xf32>
    tpu.vector_store %arg13[%237, %c0_127, %c0_128], %240 {strides = array<i32>} : memref<8x8x128xf32, #tpu.memory_space<vmem>>, vector<1x8x128xf32>,
    %c4_i32_129 = arith.constant 4 : i32
    %241 = arith.index_cast %c4_i32_129 : i32 to index
    %c0_130 = arith.constant 0 : index
    %c0_131 = arith.constant 0 : index
    %242 = vector.load %arg12[%241, %c0_130, %c0_131] : memref<8x8x128xf32, #tpu.memory_space<vmem>>, vector<1x8x128xf32>
    %243 = vector.shape_cast %242 : vector<1x8x128xf32> to vector<8x128xf32>
    %244 = arith.mulf %243, %236 : vector<8x128xf32>
    %cst_132 = arith.constant 1.000000e+00 : f32
    %245 = vector.broadcast %cst_132 : f32 to vector<8x128xf32>
    %246 = arith.subf %245, %243 : vector<8x128xf32>
    %247 = arith.index_cast %c4_i32_129 : i32 to index
    %c0_133 = arith.constant 0 : index
    %c0_134 = arith.constant 0 : index
    %248 = vector.load %arg13[%247, %c0_133, %c0_134] : memref<8x8x128xf32, #tpu.memory_space<vmem>>, vector<1x8x128xf32>
    %249 = vector.shape_cast %248 : vector<1x8x128xf32> to vector<8x128xf32>
    %250 = arith.mulf %246, %249 : vector<8x128xf32>
    %251 = arith.addf %244, %250 : vector<8x128xf32>
    %252 = arith.index_cast %c4_i32_129 : i32 to index
    %c0_135 = arith.constant 0 : index
    %c0_136 = arith.constant 0 : index
    %253 = vector.load %arg13[%252, %c0_135, %c0_136] : memref<8x8x128xf32, #tpu.memory_space<vmem>>, vector<1x8x128xf32>
    %254 = vector.shape_cast %253 : vector<1x8x128xf32> to vector<8x128xf32>
    %255 = vector.shape_cast %251 : vector<8x128xf32> to vector<1x8x128xf32>
    tpu.vector_store %arg13[%252, %c0_135, %c0_136], %255 {strides = array<i32>} : memref<8x8x128xf32, #tpu.memory_space<vmem>>, vector<1x8x128xf32>,
    %c5_i32_137 = arith.constant 5 : i32
    %256 = arith.index_cast %c5_i32_137 : i32 to index
    %c0_138 = arith.constant 0 : index
    %c0_139 = arith.constant 0 : index
    %257 = vector.load %arg12[%256, %c0_138, %c0_139] : memref<8x8x128xf32, #tpu.memory_space<vmem>>, vector<1x8x128xf32>
    %258 = vector.shape_cast %257 : vector<1x8x128xf32> to vector<8x128xf32>
    %259 = arith.mulf %258, %251 : vector<8x128xf32>
    %cst_140 = arith.constant 1.000000e+00 : f32
    %260 = vector.broadcast %cst_140 : f32 to vector<8x128xf32>
    %261 = arith.subf %260, %258 : vector<8x128xf32>
    %262 = arith.index_cast %c5_i32_137 : i32 to index
    %c0_141 = arith.constant 0 : index
    %c0_142 = arith.constant 0 : index
    %263 = vector.load %arg13[%262, %c0_141, %c0_142] : memref<8x8x128xf32, #tpu.memory_space<vmem>>, vector<1x8x128xf32>
    %264 = vector.shape_cast %263 : vector<1x8x128xf32> to vector<8x128xf32>
    %265 = arith.mulf %261, %264 : vector<8x128xf32>
    %266 = arith.addf %259, %265 : vector<8x128xf32>
    %267 = arith.index_cast %c5_i32_137 : i32 to index
    %c0_143 = arith.constant 0 : index
    %c0_144 = arith.constant 0 : index
    %268 = vector.load %arg13[%267, %c0_143, %c0_144] : memref<8x8x128xf32, #tpu.memory_space<vmem>>, vector<1x8x128xf32>
    %269 = vector.shape_cast %268 : vector<1x8x128xf32> to vector<8x128xf32>
    %270 = vector.shape_cast %266 : vector<8x128xf32> to vector<1x8x128xf32>
    tpu.vector_store %arg13[%267, %c0_143, %c0_144], %270 {strides = array<i32>} : memref<8x8x128xf32, #tpu.memory_space<vmem>>, vector<1x8x128xf32>,
    %c6_i32_145 = arith.constant 6 : i32
    %271 = arith.index_cast %c6_i32_145 : i32 to index
    %c0_146 = arith.constant 0 : index
    %c0_147 = arith.constant 0 : index
    %272 = vector.load %arg12[%271, %c0_146, %c0_147] : memref<8x8x128xf32, #tpu.memory_space<vmem>>, vector<1x8x128xf32>
    %273 = vector.shape_cast %272 : vector<1x8x128xf32> to vector<8x128xf32>
    %274 = arith.mulf %273, %266 : vector<8x128xf32>
    %cst_148 = arith.constant 1.000000e+00 : f32
    %275 = vector.broadcast %cst_148 : f32 to vector<8x128xf32>
    %276 = arith.subf %275, %273 : vector<8x128xf32>
    %277 = arith.index_cast %c6_i32_145 : i32 to index
    %c0_149 = arith.constant 0 : index
    %c0_150 = arith.constant 0 : index
    %278 = vector.load %arg13[%277, %c0_149, %c0_150] : memref<8x8x128xf32, #tpu.memory_space<vmem>>, vector<1x8x128xf32>
    %279 = vector.shape_cast %278 : vector<1x8x128xf32> to vector<8x128xf32>
    %280 = arith.mulf %276, %279 : vector<8x128xf32>
    %281 = arith.addf %274, %280 : vector<8x128xf32>
    %282 = arith.index_cast %c6_i32_145 : i32 to index
    %c0_151 = arith.constant 0 : index
    %c0_152 = arith.constant 0 : index
    %283 = vector.load %arg13[%282, %c0_151, %c0_152] : memref<8x8x128xf32, #tpu.memory_space<vmem>>, vector<1x8x128xf32>
    %284 = vector.shape_cast %283 : vector<1x8x128xf32> to vector<8x128xf32>
    %285 = vector.shape_cast %281 : vector<8x128xf32> to vector<1x8x128xf32>
    tpu.vector_store %arg13[%282, %c0_151, %c0_152], %285 {strides = array<i32>} : memref<8x8x128xf32, #tpu.memory_space<vmem>>, vector<1x8x128xf32>,
    %c7_i32_153 = arith.constant 7 : i32
    %286 = arith.index_cast %c7_i32_153 : i32 to index
    %c0_154 = arith.constant 0 : index
    %c0_155 = arith.constant 0 : index
    %287 = vector.load %arg12[%286, %c0_154, %c0_155] : memref<8x8x128xf32, #tpu.memory_space<vmem>>, vector<1x8x128xf32>
    %288 = vector.shape_cast %287 : vector<1x8x128xf32> to vector<8x128xf32>
    %289 = arith.mulf %288, %281 : vector<8x128xf32>
    %cst_156 = arith.constant 1.000000e+00 : f32
    %290 = vector.broadcast %cst_156 : f32 to vector<8x128xf32>
    %291 = arith.subf %290, %288 : vector<8x128xf32>
    %292 = arith.index_cast %c7_i32_153 : i32 to index
    %c0_157 = arith.constant 0 : index
    %c0_158 = arith.constant 0 : index
    %293 = vector.load %arg13[%292, %c0_157, %c0_158] : memref<8x8x128xf32, #tpu.memory_space<vmem>>, vector<1x8x128xf32>
    %294 = vector.shape_cast %293 : vector<1x8x128xf32> to vector<8x128xf32>
    %295 = arith.mulf %291, %294 : vector<8x128xf32>
    %296 = arith.addf %289, %295 : vector<8x128xf32>
    %297 = arith.index_cast %c7_i32_153 : i32 to index
    %c0_159 = arith.constant 0 : index
    %c0_160 = arith.constant 0 : index
    %298 = vector.load %arg13[%297, %c0_159, %c0_160] : memref<8x8x128xf32, #tpu.memory_space<vmem>>, vector<1x8x128xf32>
    %299 = vector.shape_cast %298 : vector<1x8x128xf32> to vector<8x128xf32>
    %300 = vector.shape_cast %296 : vector<8x128xf32> to vector<1x8x128xf32>
    tpu.vector_store %arg13[%297, %c0_159, %c0_160], %300 {strides = array<i32>} : memref<8x8x128xf32, #tpu.memory_space<vmem>>, vector<1x8x128xf32>,
    %c8_i32_161 = arith.constant 8 : i32
    %c0_162 = arith.constant 0 : index
    %c0_163 = arith.constant 0 : index
    %301 = vector.load %arg15[%c0_162, %c0_163] : memref<8x128xf32, #tpu.memory_space<vmem>>, vector<8x128xf32>
    tpu.vector_store %arg15[%c0_162, %c0_163], %296 {strides = array<i32>} : memref<8x128xf32, #tpu.memory_space<vmem>>, vector<8x128xf32>,
    %c0_164 = arith.constant 0 : index
    %c0_165 = arith.constant 0 : index
    %c0_166 = arith.constant 0 : index
    %302 = vector.load %arg13[%c0_164, %c0_165, %c0_166] : memref<8x8x128xf32, #tpu.memory_space<vmem>>, vector<8x8x128xf32>
    %c0_167 = arith.constant 0 : index
    %c0_168 = arith.constant 0 : index
    %c0_169 = arith.constant 0 : index
    %303 = vector.load %arg11[%c0_167, %c0_168, %c0_169] : memref<8x8x128xf32, #tpu.memory_space<vmem>>, vector<8x8x128xf32>
    %304 = arith.mulf %302, %303 : vector<8x8x128xf32>
    %305 = vector.shape_cast %304 : vector<8x8x128xf32> to vector<64x128xf32>
    %306 = arith.truncf %305 : vector<64x128xf32> to vector<64x128xbf16>
    %c0_170 = arith.constant 0 : index
    %c0_171 = arith.constant 0 : index
    %307 = vector.load %arg7[%c0_170, %c0_171] : memref<128x128xbf16, #tpu.memory_space<vmem>>, vector<128x128xbf16>
    %cst_172 = arith.constant dense<0.000000e+00> : vector<64x128xf32>
    %308 = tpu.matmul %306, %307, %cst_172 {dimension_numbers = #tpu.dot_dimension_numbers<[1], [0], [0], [1], [0, 0, 1, 1], [], []>} : vector<64x128xbf16>, vector<128x128xbf16>, vector<64x128xf32> -> vector<64x128xf32>
    %c0_173 = arith.constant 0 : index
    %c0_174 = arith.constant 0 : index
    %309 = vector.load %arg8[%c0_173, %c0_174] : memref<1x128xf32, #tpu.memory_space<vmem>>, vector<1x128xf32>
    %310 = vector.broadcast %309 : vector<1x128xf32> to vector<64x128xf32>
    %311 = arith.addf %308, %310 : vector<64x128xf32>
    %312 = vector.shape_cast %311 : vector<64x128xf32> to vector<8x8x128xf32>
    %c0_175 = arith.constant 0 : index
    %c0_176 = arith.constant 0 : index
    %c0_177 = arith.constant 0 : index
    %313 = vector.load %arg9[%c0_175, %c0_176, %c0_177] : memref<8x8x128xf32, #tpu.memory_space<vmem>>, vector<8x8x128xf32>
    tpu.vector_store %arg9[%c0_175, %c0_176, %c0_177], %312 {strides = array<i32>} : memref<8x8x128xf32, #tpu.memory_space<vmem>>, vector<8x8x128xf32>,
    %c0_i32_178 = arith.constant 0 : i32
    %314 = arith.cmpi eq, %arg1, %c0_i32_178 : i32
    %315 = arith.extui %314 : i1 to i32
    %c0_i32_179 = arith.constant 0 : i32
    %316 = arith.cmpi ne, %315, %c0_i32_179 : i32
    scf.if %316 {
      %c0_180 = arith.constant 0 : index
      %c0_181 = arith.constant 0 : index
      %317 = vector.load %arg10[%c0_180, %c0_181] : memref<8x256xf32, #tpu.memory_space<vmem>>, vector<8x128xf32>
      tpu.vector_store %arg10[%c0_180, %c0_181], %139 {strides = array<i32>} : memref<8x256xf32, #tpu.memory_space<vmem>>, vector<8x128xf32>,
      %c0_182 = arith.constant 0 : index
      %c128 = arith.constant 128 : index
      %318 = vector.load %arg10[%c0_182, %c128] : memref<8x256xf32, #tpu.memory_space<vmem>>, vector<8x128xf32>
      tpu.vector_store %arg10[%c0_182, %c128], %296 {strides = array<i32>} : memref<8x256xf32, #tpu.memory_space<vmem>>, vector<8x128xf32>,
    } else {
    }
    return
  }
  func.func @transform_0(%arg0: i32, %arg1: i32) -> (i32, i32, i32) {
    %c0_i32 = arith.constant 0 : i32
    %c0_i32_0 = arith.constant 0 : i32
    return %arg1, %arg0, %c0_i32 : i32, i32, i32
  }
  func.func @transform_1(%arg0: i32, %arg1: i32) -> (i32, i32) {
    %c0_i32 = arith.constant 0 : i32
    %c0_i32_0 = arith.constant 0 : i32
    %c0_i32_1 = arith.constant 0 : i32
    return %c0_i32, %c0_i32_0 : i32, i32
  }
  func.func @transform_2(%arg0: i32, %arg1: i32) -> (i32, i32) {
    %c0_i32 = arith.constant 0 : i32
    %c0_i32_0 = arith.constant 0 : i32
    %c0_i32_1 = arith.constant 0 : i32
    return %c0_i32, %c0_i32_0 : i32, i32
  }
  func.func @transform_3(%arg0: i32, %arg1: i32) -> (i32, i32) {
    %c0_i32 = arith.constant 0 : i32
    %c0_i32_0 = arith.constant 0 : i32
    %c0_i32_1 = arith.constant 0 : i32
    return %c0_i32, %c0_i32_0 : i32, i32
  }
  func.func @transform_4(%arg0: i32, %arg1: i32) -> (i32, i32) {
    %c0_i32 = arith.constant 0 : i32
    %c0_i32_0 = arith.constant 0 : i32
    %c0_i32_1 = arith.constant 0 : i32
    return %c0_i32, %c0_i32_0 : i32, i32
  }
  func.func @transform_5(%arg0: i32, %arg1: i32) -> (i32, i32) {
    %c0_i32 = arith.constant 0 : i32
    %c0_i32_0 = arith.constant 0 : i32
    %c0_i32_1 = arith.constant 0 : i32
    return %c0_i32, %c0_i32_0 : i32, i32
  }
  func.func @transform_6(%arg0: i32, %arg1: i32) -> (i32, i32) {
    %c0_i32 = arith.constant 0 : i32
    %c0_i32_0 = arith.constant 0 : i32
    %c0_i32_1 = arith.constant 0 : i32
    return %c0_i32, %c0_i32_0 : i32, i32
  }
  func.func @transform_7(%arg0: i32, %arg1: i32) -> (i32, i32, i32) {
    %c0_i32 = arith.constant 0 : i32
    %c0_i32_0 = arith.constant 0 : i32
    return %arg1, %arg0, %c0_i32 : i32, i32, i32
  }
  func.func @transform_8(%arg0: i32, %arg1: i32) -> (i32, i32) {
    %c0_i32 = arith.constant 0 : i32
    %c0_i32_0 = arith.constant 0 : i32
    return %arg0, %c0_i32 : i32, i32
  }
}

</mosaic_0001>

<llo_original>
// kernel: gilr_lstm_forward.1
$region0: #{gilr_lstm_forward.1}
  #allocation0 [shape = 'u32[]', space=smem, size = 0x4, offset = 0x4, fixed_abs, tag = 'smem constant byte address 0x4 - core index']
  #allocation1 [shape = 'u32[144,128]{1,0:T(1,128)}', space=vmem, size = 0x12000, scoped, tag = 'internal scratch']
  #allocation2 [shape = 'f32[8,8,128]{2,1,0:T(8,128)}', space=vmem, size = 0x8000, scoped, tag = 'scratch operand']
  #allocation3 [shape = 'f32[8,8,128]{2,1,0:T(8,128)}', space=vmem, size = 0x8000, scoped, tag = 'scratch operand']
  #allocation4 [shape = 'f32[8,8,128]{2,1,0:T(8,128)}', space=vmem, size = 0x8000, scoped, tag = 'scratch operand']
  #allocation5 [shape = 'f32[8,128]{1,0:T(8,128)}', space=vmem, size = 0x1000, scoped, tag = 'scratch operand']
  #allocation6 [shape = 'f32[8,128]{1,0:T(8,128)}', space=vmem, size = 0x1000, scoped, tag = 'scratch operand']
  %s0 = inlined_call_operand.vmem [shape: f32[8,16,16], index: 0, kind: input, shape index: {}]
  %s1 = inlined_call_operand.vmem [shape: bf16[16,256], index: 1, kind: input, shape index: {}]
  %s2 = inlined_call_operand.vmem [shape: f32[1,256], index: 2, kind: input, shape index: {}]
  %s3 = inlined_call_operand.vmem [shape: bf16[128,512], index: 3, kind: input, shape index: {}]
  %s4 = inlined_call_operand.vmem [shape: f32[1,512], index: 4, kind: input, shape index: {}]
  %s5 = inlined_call_operand.vmem [shape: bf16[128,128], index: 5, kind: input, shape index: {}]
  %s6 = inlined_call_operand.vmem [shape: f32[1,128], index: 6, kind: input, shape index: {}]
  %s7 = inlined_call_operand.vmem [shape: f32[8,16,128], index: 7, kind: output, shape index: {0}]
  %s8 = inlined_call_operand.vmem [shape: f32[16,256], index: 8, kind: output, shape index: {1}]
  %9 = xla_tuple %s7, %s8
  %s10 = sld [smem:[#allocation0]]
  $region149: #{gilr_lstm_forward.1} parent=0
    _
  %s12 = ssub.s32 1, %s10
  %s13 = scalar_select 0, %s12, %s10
  $region1: #{gilr_lstm_forward.1} parent=0
    #allocation7 [shape = 'u8[65536]{0}', space=vmem, size = 0x10000, scoped, tag = 'input window, operand 0']
    #allocation8 [shape = 'u8[65536]{0}', space=vmem, size = 0x10000, scoped, tag = 'output window, operand 0']
    loop: start=0, step=1, limit=4
    $region2: #{gilr_lstm_forward.1} parent=1 // loop_pre_header
      _
    $region3: #{gilr_lstm_forward.1} parent=1 // loop_header
      %s15 = sphi 0, %s19
      %p16 = scmp.ge.s32.totalorder %s15, 4
      %s22 = sphi 0, %s34
      %s23 = sphi 0, %s30
      %s24 = sphi 0, %s22
      %s25 = sphi 0, %s23
      %s26 = sphi 0, %s24
      %s27 = sphi 0, %s25
      %s39 = sphi 0, %s41
      %s42 = sphi 0, %s39
      %s43 = sphi 0, %s42
      %s59 = sphi 0, %s43
      %s63 = sphi 0, %s63
      %s65 = sphi 0, %s63
      %s66 = sphi 0, %s65
      %s80 = sphi 0, %s66
      %s84 = sphi 0, %s84
      %s86 = sphi 0, %s84
      %s87 = sphi 0, %s86
      %s101 = sphi 0, %s87
      %s105 = sphi 0, %s105
      %s107 = sphi 0, %s105
      %s108 = sphi 0, %s107
      %s122 = sphi 0, %s108
      %s126 = sphi 0, %s126
      %s128 = sphi 0, %s126
      %s129 = sphi 0, %s128
      %s143 = sphi 0, %s129
      %s147 = sphi 0, %s147
      %s149 = sphi 0, %s147
      %s150 = sphi 0, %s149
      %s164 = sphi 0, %s150
      %s168 = sphi 0, %s168
      %s170 = sphi 0, %s168
      %s171 = sphi 0, %s170
      %s185 = sphi 0, %s171
      %s193 = sphi 0, %s195
      %s196 = sphi 0, %s193
      %s197 = sphi 0, %s196
      %s213 = sphi 0, %s197
      %s219 = sphi 0, %s221
      %s222 = sphi 0, %s219
      %s223 = sphi 0, %s222
      %s239 = sphi 0, %s223
    $region4: #{gilr_lstm_forward.1} parent=1 // loop_header_branch
      %18 = sbr.rel (%p16) target = $region8
    $region5: #{gilr_lstm_forward.1} parent=1 // loop_body
      %s20 = ssub.s32 %s15, 1
      %s21 = ssub.s32 %s15, 2
      %s28 = sadd.s32 1, %s23
      %p29 = scmp.ge.s32.totalorder %s28, 1
      %s30 = scalar_select %p29, 0, %s28
      %s31 = sadd.s32 1, %s22
      %s32 = scalar_select %p29, %s31, %s22
      %p33 = scmp.ge.s32.totalorder %s32, 2
      %s34 = scalar_select %p33, 0, %s32
      %s35 = ssub.s32 %s23, %s30
      %s36 = ssub.s32 %s22, %s34
      %s37 = sor.u32 %s35, %s36
      %p38 = scmp.eq.s32.totalorder %s37, 0
      %s40 = sadd.s32 %s39, 1
      %s41 = scalar_select %p38, %s39, %s40
      %p44 = pneg %p38
      %p45 = scmp.eq.s32.totalorder %s15, 1
      %p46 = por %p44, %p45
      %p47 = scmp.ne.s32.totalorder %s39, %s42
      %p48 = scmp.eq.s32.totalorder %s15, 0
      %p49 = por %p47, %p48
      %p50 = scmp.ne.s32.totalorder %s39, %s42
      %p51 = scmp.eq.s32.totalorder %s20, 1
      %p52 = por %p50, %p51
      %p53 = scmp.ne.s32.totalorder %s42, %s43
      %p54 = scmp.eq.s32.totalorder %s20, 0
      %p55 = por %p53, %p54
      %p56 = scmp.ne.s32.totalorder %s42, %s43
      %p57 = scmp.eq.s32.totalorder %s21, 1
      %p58 = por %p56, %p57
      %p60 = scmp.ne.s32.totalorder %s43, %s59
      %p61 = scmp.eq.s32.totalorder %s21, 0
      %p62 = por %p60, %p61
      %s64 = sadd.s32 %s63, 1
      %p67 = scmp.eq.s32.totalorder %s15, 1
      %p68 = scmp.ne.s32.totalorder %s63, %s65
      %p69 = scmp.eq.s32.totalorder %s15, 0
      %p70 = por %p68, %p69
      %p71 = scmp.ne.s32.totalorder %s63, %s65
      %p72 = scmp.eq.s32.totalorder %s20, 1
      %p73 = por %p71, %p72
      %p74 = scmp.ne.s32.totalorder %s65, %s66
      %p75 = scmp.eq.s32.totalorder %s20, 0
      %p76 = por %p74, %p75
      %p77 = scmp.ne.s32.totalorder %s65, %s66
      %p78 = scmp.eq.s32.totalorder %s21, 1
      %p79 = por %p77, %p78
      %p81 = scmp.ne.s32.totalorder %s66, %s80
      %p82 = scmp.eq.s32.totalorder %s21, 0
      %p83 = por %p81, %p82
      %s85 = sadd.s32 %s84, 1
      %p88 = scmp.eq.s32.totalorder %s15, 1
      %p89 = scmp.ne.s32.totalorder %s84, %s86
      %p90 = scmp.eq.s32.totalorder %s15, 0
      %p91 = por %p89, %p90
      %p92 = scmp.ne.s32.totalorder %s84, %s86
      %p93 = scmp.eq.s32.totalorder %s20, 1
      %p94 = por %p92, %p93
      %p95 = scmp.ne.s32.totalorder %s86, %s87
      %p96 = scmp.eq.s32.totalorder %s20, 0
      %p97 = por %p95, %p96
      %p98 = scmp.ne.s32.totalorder %s86, %s87
      %p99 = scmp.eq.s32.totalorder %s21, 1
      %p100 = por %p98, %p99
      %p102 = scmp.ne.s32.totalorder %s87, %s101
      %p103 = scmp.eq.s32.totalorder %s21, 0
      %p104 = por %p102, %p103
      %s106 = sadd.s32 %s105, 1
      %p109 = scmp.eq.s32.totalorder %s15, 1
      %p110 = scmp.ne.s32.totalorder %s105, %s107
      %p111 = scmp.eq.s32.totalorder %s15, 0
      %p112 = por %p110, %p111
      %p113 = scmp.ne.s32.totalorder %s105, %s107
      %p114 = scmp.eq.s32.totalorder %s20, 1
      %p115 = por %p113, %p114
      %p116 = scmp.ne.s32.totalorder %s107, %s108
      %p117 = scmp.eq.s32.totalorder %s20, 0
      %p118 = por %p116, %p117
      %p119 = scmp.ne.s32.totalorder %s107, %s108
      %p120 = scmp.eq.s32.totalorder %s21, 1
      %p121 = por %p119, %p120
      %p123 = scmp.ne.s32.totalorder %s108, %s122
      %p124 = scmp.eq.s32.totalorder %s21, 0
      %p125 = por %p123, %p124
      %s127 = sadd.s32 %s126, 1
      %p130 = scmp.eq.s32.totalorder %s15, 1
      %p131 = scmp.ne.s32.totalorder %s126, %s128
      %p132 = scmp.eq.s32.totalorder %s15, 0
      %p133 = por %p131, %p132
      %p134 = scmp.ne.s32.totalorder %s126, %s128
      %p135 = scmp.eq.s32.totalorder %s20, 1
      %p136 = por %p134, %p135
      %p137 = scmp.ne.s32.totalorder %s128, %s129
      %p138 = scmp.eq.s32.totalorder %s20, 0
      %p139 = por %p137, %p138
      %p140 = scmp.ne.s32.totalorder %s128, %s129
      %p141 = scmp.eq.s32.totalorder %s21, 1
      %p142 = por %p140, %p141
      %p144 = scmp.ne.s32.totalorder %s129, %s143
      %p145 = scmp.eq.s32.totalorder %s21, 0
      %p146 = por %p144, %p145
      %s148 = sadd.s32 %s147, 1
      %p151 = scmp.eq.s32.totalorder %s15, 1
      %p152 = scmp.ne.s32.totalorder %s147, %s149
      %p153 = scmp.eq.s32.totalorder %s15, 0
      %p154 = por %p152, %p153
      %p155 = scmp.ne.s32.totalorder %s147, %s149
      %p156 = scmp.eq.s32.totalorder %s20, 1
      %p157 = por %p155, %p156
      %p158 = scmp.ne.s32.totalorder %s149, %s150
      %p159 = scmp.eq.s32.totalorder %s20, 0
      %p160 = por %p158, %p159
      %p161 = scmp.ne.s32.totalorder %s149, %s150
      %p162 = scmp.eq.s32.totalorder %s21, 1
      %p163 = por %p161, %p162
      %p165 = scmp.ne.s32.totalorder %s150, %s164
      %p166 = scmp.eq.s32.totalorder %s21, 0
      %p167 = por %p165, %p166
      %s169 = sadd.s32 %s168, 1
      %p172 = scmp.eq.s32.totalorder %s15, 1
      %p173 = scmp.ne.s32.totalorder %s168, %s170
      %p174 = scmp.eq.s32.totalorder %s15, 0
      %p175 = por %p173, %p174
      %p176 = scmp.ne.s32.totalorder %s168, %s170
      %p177 = scmp.eq.s32.totalorder %s20, 1
      %p178 = por %p176, %p177
      %p179 = scmp.ne.s32.totalorder %s170, %s171
      %p180 = scmp.eq.s32.totalorder %s20, 0
      %p181 = por %p179, %p180
      %p182 = scmp.ne.s32.totalorder %s170, %s171
      %p183 = scmp.eq.s32.totalorder %s21, 1
      %p184 = por %p182, %p183
      %p186 = scmp.ne.s32.totalorder %s171, %s185
      %p187 = scmp.eq.s32.totalorder %s21, 0
      %p188 = por %p186, %p187
      %s189 = ssub.s32 %s23, %s30
      %s190 = ssub.s32 %s22, %s34
      %s191 = sor.u32 %s189, %s190
      %p192 = scmp.eq.s32.totalorder %s191, 0
      %s194 = sadd.s32 %s193, 1
      %s195 = scalar_select %p192, %s193, %s194
      %p198 = pneg %p192
      %p199 = scmp.eq.s32.totalorder %s15, 1
      %p200 = por %p198, %p199
      %p201 = scmp.ne.s32.totalorder %s193, %s196
      %p202 = scmp.eq.s32.totalorder %s15, 0
      %p203 = por %p201, %p202
      %p204 = scmp.ne.s32.totalorder %s193, %s196
      %p205 = scmp.eq.s32.totalorder %s20, 1
      %p206 = por %p204, %p205
      %p207 = scmp.ne.s32.totalorder %s196, %s197
      %p208 = scmp.eq.s32.totalorder %s20, 0
      %p209 = por %p207, %p208
      %p210 = scmp.ne.s32.totalorder %s196, %s197
      %p211 = scmp.eq.s32.totalorder %s21, 1
      %p212 = por %p210, %p211
      %p214 = scmp.ne.s32.totalorder %s197, %s213
      %p215 = scmp.eq.s32.totalorder %s21, 0
      %p216 = por %p214, %p215
      %s217 = ssub.s32 %s22, %s34
      %p218 = scmp.eq.s32.totalorder %s217, 0
      %s220 = sadd.s32 %s219, 1
      %s221 = scalar_select %p218, %s219, %s220
      %p224 = pneg %p218
      %p225 = scmp.eq.s32.totalorder %s15, 1
      %p226 = por %p224, %p225
      %p227 = scmp.ne.s32.totalorder %s219, %s222
      %p228 = scmp.eq.s32.totalorder %s15, 0
      %p229 = por %p227, %p228
      %p230 = scmp.ne.s32.totalorder %s219, %s222
      %p231 = scmp.eq.s32.totalorder %s20, 1
      %p232 = por %p230, %p231
      %p233 = scmp.ne.s32.totalorder %s222, %s223
      %p234 = scmp.eq.s32.totalorder %s20, 0
      %p235 = por %p233, %p234
      %p236 = scmp.ne.s32.totalorder %s222, %s223
      %p237 = scmp.eq.s32.totalorder %s21, 1
      %p238 = por %p236, %p237
      %p240 = scmp.ne.s32.totalorder %s223, %s239
      %p241 = scmp.eq.s32.totalorder %s21, 0
      %p242 = por %p240, %p241
      %p243 = scmp.le.s32.totalorder 1, %s15
      %p244 = scmp.lt.s32.totalorder %s15, 3
      %p245 = pnand %p243, %p244
      %p246 = pneg %p245
      // Predicated region
      $region9: #{gilr_lstm_forward.1} parent=5 // pred_check
        _
      $region10: #{gilr_lstm_forward.1} parent=5 // pred_check_branch
        %248 = sbr.rel (%p245) target = $region12
      $region11: #{gilr_lstm_forward.1} parent=5 // pred_region
        %s249 = ssub.s32 %s15, 1
        // Predicated region
        $region13: #{gilr_lstm_forward.1} parent=11 // pred_check
          %p250 = pneg %p76
        $region14: #{gilr_lstm_forward.1} parent=11 // pred_check_branch
          %252 = sbr.rel (%p250) target = $region16
        $region15: #{gilr_lstm_forward.1} parent=11 // pred_region
          _
        $region16: #{gilr_lstm_forward.1} parent=11 // pred_fallthru
          _
        // Predicated region
        $region17: #{gilr_lstm_forward.1} parent=11 // pred_check
          %p253 = pneg %p97
        $region18: #{gilr_lstm_forward.1} parent=11 // pred_check_branch
          %255 = sbr.rel (%p253) target = $region20
        $region19: #{gilr_lstm_forward.1} parent=11 // pred_region
          _
        $region20: #{gilr_lstm_forward.1} parent=11 // pred_fallthru
          _
        // Predicated region
        $region21: #{gilr_lstm_forward.1} parent=11 // pred_check
          %p256 = pneg %p118
        $region22: #{gilr_lstm_forward.1} parent=11 // pred_check_branch
          %258 = sbr.rel (%p256) target = $region24
        $region23: #{gilr_lstm_forward.1} parent=11 // pred_region
          _
        $region24: #{gilr_lstm_forward.1} parent=11 // pred_fallthru
          _
        // Predicated region
        $region25: #{gilr_lstm_forward.1} parent=11 // pred_check
          %p259 = pneg %p139
        $region26: #{gilr_lstm_forward.1} parent=11 // pred_check_branch
          %261 = sbr.rel (%p259) target = $region28
        $region27: #{gilr_lstm_forward.1} parent=11 // pred_region
          _
        $region28: #{gilr_lstm_forward.1} parent=11 // pred_fallthru
          _
        // Predicated region
        $region29: #{gilr_lstm_forward.1} parent=11 // pred_check
          %p262 = pneg %p160
        $region30: #{gilr_lstm_forward.1} parent=11 // pred_check_branch
          %264 = sbr.rel (%p262) target = $region32
        $region31: #{gilr_lstm_forward.1} parent=11 // pred_region
          _
        $region32: #{gilr_lstm_forward.1} parent=11 // pred_fallthru
          _
        // Predicated region
        $region33: #{gilr_lstm_forward.1} parent=11 // pred_check
          %p265 = pneg %p181
        $region34: #{gilr_lstm_forward.1} parent=11 // pred_check_branch
          %267 = sbr.rel (%p265) target = $region36
        $region35: #{gilr_lstm_forward.1} parent=11 // pred_region
          _
        $region36: #{gilr_lstm_forward.1} parent=11 // pred_fallthru
          _
      $region12: #{gilr_lstm_forward.1} parent=5 // pred_fallthru
        _
      %p268 = scmp.lt.s32.totalorder %s15, 2
      // Predicated region
      $region37: #{gilr_lstm_forward.1} parent=5 // pred_check
        %p269 = pneg %p268
      $region38: #{gilr_lstm_forward.1} parent=5 // pred_check_branch
        %271 = sbr.rel (%p269) target = $region40
      $region39: #{gilr_lstm_forward.1} parent=5 // pred_region
        // Predicated region
        $region41: #{gilr_lstm_forward.1} parent=39 // pred_check
          %p272 = pneg %p49
        $region42: #{gilr_lstm_forward.1} parent=39 // pred_check_branch
          %274 = sbr.rel (%p272) target = $region44
        $region43: #{gilr_lstm_forward.1} parent=39 // pred_region
          %s275 = sand.u32 %s39, 1
          %s276 = sand.u32 %s39, 1
          %s277 = smul.addr %s276, 64
          %s278 = scalar_lea.vmem [#allocation7], %s277
          %s279 = smul.u32 8, %s23
          %s280 = smul.addr %s279, 2
          %s281 = sadd.s32 %s22, %s280
          %s282 = smul.addr %s281, 8
          %s283 = scalar_lea.vmem %s0, %s282
          // Predicated region
          $region45: #{gilr_lstm_forward.1} parent=43 // pred_check
            _
          $region46: #{gilr_lstm_forward.1} parent=43 // pred_check_branch
            %285 = sbr.rel (0) target = $region48
          $region47: #{gilr_lstm_forward.1} parent=43 // pred_region
            // Predicated region
            $region49: #{gilr_lstm_forward.1} parent=47 // pred_check
              _
            $region50: #{gilr_lstm_forward.1} parent=47 // pred_check_branch
              %287 = sbr.rel (0) target = $region52
            $region51: #{gilr_lstm_forward.1} parent=47 // pred_region
              // Predicated region
              $region64: #{gilr_lstm_forward.1} parent=51 // pred_check
                _
              $region65: #{gilr_lstm_forward.1} parent=51 // pred_check_branch
                %316 = sbr.rel (0) target = $region67
              $region66: #{gilr_lstm_forward.1} parent=51 // pred_region
                loop: start=0, step=1, limit=1
                $region68: #{gilr_lstm_forward.1} parent=66 // loop_pre_header
                  _
                $region69: #{gilr_lstm_forward.1} parent=66 // loop_header
                  %s318 = sphi 0, %s322
                  %p319 = scmp.ge.s32.totalorder %s318, 1
                  %s323 = sphi %s283, %s283
                  %s324 = sphi %s278, %s278
                $region70: #{gilr_lstm_forward.1} parent=66 // loop_header_branch
                  %321 = sbr.rel (%p319) target = $region74
                $region71: #{gilr_lstm_forward.1} parent=66 // loop_body
                  %v325 = vld [vmem:[%s323] sm:$0xff]
                  %326 = vst [vmem:[%s324] sm:$0xff] %v325
                  %v327 = vld [vmem:[%s323 + $0x10] sm:$0xff]
                  %328 = vst [vmem:[%s324 + $0x8] sm:$0xff] %v327
                  %v329 = vld [vmem:[%s323 + $0x20] sm:$0xff]
                  %330 = vst [vmem:[%s324 + $0x10] sm:$0xff] %v329
                  %v331 = vld [vmem:[%s323 + $0x30] sm:$0xff]
                  %332 = vst [vmem:[%s324 + $0x18] sm:$0xff] %v331
                  %v333 = vld [vmem:[%s323 + $0x40] sm:$0xff]
                  %334 = vst [vmem:[%s324 + $0x20] sm:$0xff] %v333
                  %v335 = vld [vmem:[%s323 + $0x50] sm:$0xff]
                  %336 = vst [vmem:[%s324 + $0x28] sm:$0xff] %v335
                  %v337 = vld [vmem:[%s323 + $0x60] sm:$0xff]
                  %338 = vst [vmem:[%s324 + $0x30] sm:$0xff] %v337
                  %v339 = vld [vmem:[%s323 + $0x70] sm:$0xff]
                  %340 = vst [vmem:[%s324 + $0x38] sm:$0xff] %v339
                $region72: #{gilr_lstm_forward.1} parent=66 // loop_footer
                  %s322 = sadd.s32 1, %s318
                $region73: #{gilr_lstm_forward.1} parent=66 // loop_footer_branch
                  %317 = sbr.rel target = $region69
                $region74: #{gilr_lstm_forward.1} parent=66 // loop_exit
                  _
              $region67: #{gilr_lstm_forward.1} parent=51 // pred_fallthru
                _
              // Predicated region
              $region75: #{gilr_lstm_forward.1} parent=51 // pred_check
                _
              $region76: #{gilr_lstm_forward.1} parent=51 // pred_check_branch
                %342 = sbr.rel target = $region78
              $region77: #{gilr_lstm_forward.1} parent=51 // pred_region
                _
              $region78: #{gilr_lstm_forward.1} parent=51 // pred_fallthru
                _
            $region52: #{gilr_lstm_forward.1} parent=47 // pred_fallthru
              _
            // Predicated region
            $region53: #{gilr_lstm_forward.1} parent=47 // pred_check
              _
            $region54: #{gilr_lstm_forward.1} parent=47 // pred_check_branch
              %289 = sbr.rel target = $region56
            $region55: #{gilr_lstm_forward.1} parent=47 // pred_region
              loop: start=0, step=1, limit=1
              $region57: #{gilr_lstm_forward.1} parent=55 // loop_pre_header
                _
              $region58: #{gilr_lstm_forward.1} parent=55 // loop_header
                %s292 = sphi 0, %s296
                %p293 = scmp.ge.s32.totalorder %s292, 1
                %s297 = sphi %s283, %s283
                %s298 = sphi %s278, %s278
              $region59: #{gilr_lstm_forward.1} parent=55 // loop_header_branch
                %295 = sbr.rel (%p293) target = $region63
              $region60: #{gilr_lstm_forward.1} parent=55 // loop_body
                %v299 = vld [vmem:[%s297] sm:$0xff]
                %300 = vst [vmem:[%s298] sm:$0xff] %v299
                %v301 = vld [vmem:[%s297 + $0x10] sm:$0xff]
                %302 = vst [vmem:[%s298 + $0x8] sm:$0xff] %v301
                %v303 = vld [vmem:[%s297 + $0x20] sm:$0xff]
                %304 = vst [vmem:[%s298 + $0x10] sm:$0xff] %v303
                %v305 = vld [vmem:[%s297 + $0x30] sm:$0xff]
                %306 = vst [vmem:[%s298 + $0x18] sm:$0xff] %v305
                %v307 = vld [vmem:[%s297 + $0x40] sm:$0xff]
                %308 = vst [vmem:[%s298 + $0x20] sm:$0xff] %v307
                %v309 = vld [vmem:[%s297 + $0x50] sm:$0xff]
                %310 = vst [vmem:[%s298 + $0x28] sm:$0xff] %v309
                %v311 = vld [vmem:[%s297 + $0x60] sm:$0xff]
                %312 = vst [vmem:[%s298 + $0x30] sm:$0xff] %v311
                %v313 = vld [vmem:[%s297 + $0x70] sm:$0xff]
                %314 = vst [vmem:[%s298 + $0x38] sm:$0xff] %v313
              $region61: #{gilr_lstm_forward.1} parent=55 // loop_footer
                %s296 = sadd.s32 1, %s292
              $region62: #{gilr_lstm_forward.1} parent=55 // loop_footer_branch
                %291 = sbr.rel target = $region58
              $region63: #{gilr_lstm_forward.1} parent=55 // loop_exit
                _
            $region56: #{gilr_lstm_forward.1} parent=47 // pred_fallthru
              _
          $region48: #{gilr_lstm_forward.1} parent=43 // pred_fallthru
            _
          %343 = vnop
        $region44: #{gilr_lstm_forward.1} parent=39 // pred_fallthru
          _
      $region40: #{gilr_lstm_forward.1} parent=5 // pred_fallthru
        _
      %p344 = scmp.le.s32.totalorder 1, %s15
      %p345 = scmp.lt.s32.totalorder %s15, 3
      %p346 = pnand %p344, %p345
      %p347 = pneg %p346
      // Predicated region
      $region79: #{gilr_lstm_forward.1} parent=5 // pred_check
        _
      $region80: #{gilr_lstm_forward.1} parent=5 // pred_check_branch
        %349 = sbr.rel (%p346) target = $region82
      $region81: #{gilr_lstm_forward.1} parent=5 // pred_region
        %s350 = ssub.s32 %s15, 1
        %s351 = sand.u32 %s42, 1
        %s352 = sand.u32 %s42, 1
        %s353 = smul.addr %s352, 64
        %s354 = scalar_lea.vmem [#allocation7], %s353
        // Predicated region
        $region83: #{gilr_lstm_forward.1} parent=81 // pred_check
          %p355 = pneg %p55
        $region84: #{gilr_lstm_forward.1} parent=81 // pred_check_branch
          %357 = sbr.rel (%p355) target = $region86
        $region85: #{gilr_lstm_forward.1} parent=81 // pred_region
          _
        $region86: #{gilr_lstm_forward.1} parent=81 // pred_fallthru
          _
        %s358 = sand.u32 %s42, 1
        %s359 = sand.u32 %s42, 1
        %s360 = smul.addr %s359, 64
        %s361 = scalar_lea.vmem [#allocation7], %s360
        %p362 = pneg %p55
        %p363 = pneg %p52
        %p364 = pneg %p76
        %p365 = pneg %p73
        %p366 = pneg %p97
        %p367 = pneg %p94
        %p368 = pneg %p118
        %p369 = pneg %p115
        %p370 = pneg %p139
        %p371 = pneg %p136
        %p372 = pneg %p160
        %p373 = pneg %p157
        %p374 = pneg %p181
        %p375 = pneg %p178
        %p376 = pneg %p209
        %p377 = pneg %p206
        %s378 = sand.u32 %s196, 1
        %s379 = sand.u32 %s196, 1
        %s380 = smul.addr %s379, 64
        %s381 = scalar_lea.vmem [#allocation8], %s380
        %p382 = pneg %p235
        %p383 = pneg %p232
        %p384 = scmp.lt.s32.totalorder %s24, 1
        %s385 = scalar_select %p384, %s24, 1
        %s386 = smul.addr %s385, 2
        %s387 = smul.addr %s386, 8
        %s388 = scalar_lea.vmem %s8, %s387
        %s389 = smul.u32 8, %s25
        %s390 = smul.u32 8, %s25
        %p391 = scmp.lt.s32.totalorder %s24, 1
        %s392 = scalar_select %p391, %s24, 1
        %s393 = smul.addr %s392, 2
        %s394 = smul.addr %s393, 8
        %s395 = scalar_lea.vmem %s8, %s394
        %p397 = scmp.eq.s32.totalorder %s25, 0
        // Predicated region
        $region87: #{gilr_lstm_forward.1} parent=81 // pred_check
          %p398 = pneg %p397
        $region88: #{gilr_lstm_forward.1} parent=81 // pred_check_branch
          %400 = sbr.rel (%p398) target = $region90
        $region89: #{gilr_lstm_forward.1} parent=81 // pred_region
          %401 = vst [vmem:[#allocation5] sm:$0xff] 0.0
          %402 = vst [vmem:[#allocation6] sm:$0xff] 0.0
        $region90: #{gilr_lstm_forward.1} parent=81 // pred_fallthru
          _
        %v403 = vld [vmem:[%s354] sm:$0xff]
        %v404 = vld [vmem:[%s354 + $0x8] sm:$0xff]
        %v405 = vld [vmem:[%s354 + $0x10] sm:$0xff]
        %v406 = vld [vmem:[%s354 + $0x18] sm:$0xff]
        %v407 = vld [vmem:[%s354 + $0x20] sm:$0xff]
        %v408 = vld [vmem:[%s354 + $0x28] sm:$0xff]
        %v409 = vld [vmem:[%s354 + $0x30] sm:$0xff]
        %v410 = vld [vmem:[%s354 + $0x38] sm:$0xff]
        %v411 = vpack.c.bf16 %v404, %v403
        %v412 = vpack.c.bf16 %v406, %v405
        %v413 = vpack.c.bf16 %v408, %v407
        %v414 = vpack.c.bf16 %v410, %v409
        %v415 = vld [vmem:[%s1] sm:$0xff]
        %v416 = vld [vmem:[%s1 + $0x8] sm:$0xff]
        %v417 = vld [vmem:[%s2] sm:$0x3]
        %v419 = vlaneseq
        %v420 = vshrl.u32 %v419, 7
        %v421 = vsub.s32 0, %v420
        %v422 = vrot.slane %v417, %v421
        %v423 = vlaneseq
        %v424 = vshrl.u32 %v423, 7
        %v425 = vsub.s32 1, %v424
        %v426 = vrot.slane %v417, %v425
        %v431 = vunpack.c.l.b16 %v415
        %v432 = vunpack.c.h.b16 %v415
        %v433 = vunpack.c.l.b16 %v416
        %v434 = vunpack.c.h.b16 %v416
        %v435 = vpack.c.b16 %v433, %v431
        %v436 = vpack.c.b16 %v434, %v432
        %vm439 = vcmask 130048
        %v441 = vsel %vm439, %v411, 0
        %v444 = vsel %vm439, %v412, 0
        %v447 = vsel %vm439, %v413, 0
        %v450 = vsel %vm439, %v414, 0
        %452 = vmatprep.subr.bf16.mxu0 %v436
        %453 = vmatpush1.bf16.msra.mxu0 %v435
        %454 = vmatprep.subr.bf16.mxu0 0
        %455 = vmatpush1.bf16.msra.mxu0 0
        %456 = vmatprep.subr.bf16.mxu0 0
        %457 = vmatpush1.bf16.msra.mxu0 0
        %458 = vmatprep.subr.bf16.mxu0 0
        %459 = vmatpush1.bf16.msra.mxu0 0
        %460 = vmatprep.subr.bf16.mxu0 0
        %461 = vmatpush1.bf16.msra.mxu0 0
        %462 = vmatprep.subr.bf16.mxu0 0
        %463 = vmatpush1.bf16.msra.mxu0 0
        %464 = vmatprep.subr.bf16.mxu0 0
        %465 = vmatpush1.bf16.msra.mxu0 0
        %466 = vmatprep.subr.bf16.mxu0 0
        %467 = vmatpush1.bf16.msra.mxu0 0
        %468 = vmatprep.subr.bf16.mxu0 0
        %469 = vmatpush1.bf16.msra.mxu0 0
        %470 = vmatprep.subr.bf16.mxu0 0
        %471 = vmatpush1.bf16.msra.mxu0 0
        %472 = vmatprep.subr.bf16.mxu0 0
        %473 = vmatpush1.bf16.msra.mxu0 0
        %474 = vmatprep.subr.bf16.mxu0 0
        %475 = vmatpush1.bf16.msra.mxu0 0
        %476 = vmatprep.subr.bf16.mxu0 0
        %477 = vmatpush1.bf16.msra.mxu0 0
        %478 = vmatprep.subr.bf16.mxu0 0
        %479 = vmatpush1.bf16.msra.mxu0 0
        %480 = vmatprep.subr.bf16.mxu0 0
        %481 = vmatpush1.bf16.msra.mxu0 0
        %482 = vmatprep.subr.bf16.mxu0 0
        %483 = vmatpush1.bf16.msra.mxu0 0
        %484 = vmatprep.mubr.bf16.mxu0 0
        %485 = vmatmul.mubr.bf16.gmra.mrb[0].mxu0 %v441
        %v486 = vpop.f32.mrb[0].mxu0
        %v487 = vadd.f32 %v422, %v486
        %v488 = vpop.f32.mrb[0].mxu0
        %v489 = vadd.f32 %v426, %v488
        %v490 = vpop.f32.mrb[0].mxu0
        %v491 = vadd.f32 %v422, %v490
        %v492 = vpop.f32.mrb[0].mxu0
        %v493 = vadd.f32 %v426, %v492
        %494 = vmatprep.mubr.bf16.mxu0 0
        %495 = vmatmul.mubr.bf16.gmra.mrb[0].mxu0 %v444
        %v496 = vpop.f32.mrb[0].mxu0
        %v497 = vadd.f32 %v422, %v496
        %v498 = vpop.f32.mrb[0].mxu0
        %v499 = vadd.f32 %v426, %v498
        %v500 = vpop.f32.mrb[0].mxu0
        %v501 = vadd.f32 %v422, %v500
        %v502 = vpop.f32.mrb[0].mxu0
        %v503 = vadd.f32 %v426, %v502
        %504 = vmatprep.mubr.bf16.mxu0 0
        %505 = vmatmul.mubr.bf16.gmra.mrb[0].mxu0 %v447
        %v506 = vpop.f32.mrb[0].mxu0
        %v507 = vadd.f32 %v422, %v506
        %v508 = vpop.f32.mrb[0].mxu0
        %v509 = vadd.f32 %v426, %v508
        %v510 = vpop.f32.mrb[0].mxu0
        %v511 = vadd.f32 %v422, %v510
        %v512 = vpop.f32.mrb[0].mxu0
        %v513 = vadd.f32 %v426, %v512
        %514 = vmatprep.mubr.bf16.mxu0 0
        %515 = vmatmul.mubr.bf16.gmra.mrb[0].mxu0 %v450
        %v516 = vpop.f32.mrb[0].mxu0
        %v517 = vadd.f32 %v422, %v516
        %v518 = vpop.f32.mrb[0].mxu0
        %v519 = vadd.f32 %v426, %v518
        %v520 = vpop.f32.mrb[0].mxu0
        %v521 = vadd.f32 %v422, %v520
        %v522 = vpop.f32.mrb[0].mxu0
        %v523 = vadd.f32 %v426, %v522
        %524 = vdwg.mxu0
        %v525 = vtanh.pop %v487
        %v526 = vtanh.pop %v491
        %v527 = vtanh.pop %v497
        %v528 = vtanh.pop %v501
        %v529 = vtanh.pop %v507
        %v530 = vtanh.pop %v511
        %v531 = vtanh.pop %v517
        %v532 = vtanh.pop %v521
        %533 = vst [vmem:[#allocation2] sm:$0xff] %v525
        %534 = vst [vmem:[#allocation2 + $0x8] sm:$0xff] %v526
        %535 = vst [vmem:[#allocation2 + $0x10] sm:$0xff] %v527
        %536 = vst [vmem:[#allocation2 + $0x18] sm:$0xff] %v528
        %537 = vst [vmem:[#allocation2 + $0x20] sm:$0xff] %v529
        %538 = vst [vmem:[#allocation2 + $0x28] sm:$0xff] %v530
        %539 = vst [vmem:[#allocation2 + $0x30] sm:$0xff] %v531
        %540 = vst [vmem:[#allocation2 + $0x38] sm:$0xff] %v532
        %v541 = vxor.u32 %v489, 2147483648
        %v542 = vxor.u32 %v493, 2147483648
        %v543 = vxor.u32 %v499, 2147483648
        %v544 = vxor.u32 %v503, 2147483648
        %v545 = vxor.u32 %v509, 2147483648
        %v546 = vxor.u32 %v513, 2147483648
        %v547 = vxor.u32 %v519, 2147483648
        %v548 = vxor.u32 %v523, 2147483648
        %v549 = vmul.f32 %v541, 1.442695
        %v550 = vpow.pop %v549
        %v551 = vmul.f32 %v542, 1.442695
        %v552 = vpow.pop %v551
        %v553 = vmul.f32 %v543, 1.442695
        %v554 = vpow.pop %v553
        %v555 = vmul.f32 %v544, 1.442695
        %v556 = vpow.pop %v555
        %v557 = vmul.f32 %v545, 1.442695
        %v558 = vpow.pop %v557
        %v559 = vmul.f32 %v546, 1.442695
        %v560 = vpow.pop %v559
        %v561 = vmul.f32 %v547, 1.442695
        %v562 = vpow.pop %v561
        %v563 = vmul.f32 %v548, 1.442695
        %v564 = vpow.pop %v563
        %v565 = vadd.f32 %v550, 1.0
        %v566 = vadd.f32 %v552, 1.0
        %v567 = vadd.f32 %v554, 1.0
        %v568 = vadd.f32 %v556, 1.0
        %v569 = vadd.f32 %v558, 1.0
        %v570 = vadd.f32 %v560, 1.0
        %v571 = vadd.f32 %v562, 1.0
        %v572 = vadd.f32 %v564, 1.0
        %v573 = vrcp.pop %v565
        %v574 = vmul.f32 1.0, %v573
        %v575 = vrcp.pop %v566
        %v576 = vmul.f32 1.0, %v575
        %v577 = vrcp.pop %v567
        %v578 = vmul.f32 1.0, %v577
        %v579 = vrcp.pop %v568
        %v580 = vmul.f32 1.0, %v579
        %v581 = vrcp.pop %v569
        %v582 = vmul.f32 1.0, %v581
        %v583 = vrcp.pop %v570
        %v584 = vmul.f32 1.0, %v583
        %v585 = vrcp.pop %v571
        %v586 = vmul.f32 1.0, %v585
        %v587 = vrcp.pop %v572
        %v588 = vmul.f32 1.0, %v587
        %589 = vst [vmem:[#allocation3] sm:$0xff] %v574
        %590 = vst [vmem:[#allocation3 + $0x8] sm:$0xff] %v576
        %591 = vst [vmem:[#allocation3 + $0x10] sm:$0xff] %v578
        %592 = vst [vmem:[#allocation3 + $0x18] sm:$0xff] %v580
        %593 = vst [vmem:[#allocation3 + $0x20] sm:$0xff] %v582
        %594 = vst [vmem:[#allocation3 + $0x28] sm:$0xff] %v584
        %595 = vst [vmem:[#allocation3 + $0x30] sm:$0xff] %v586
        %596 = vst [vmem:[#allocation3 + $0x38] sm:$0xff] %v588
        %v597 = vld [vmem:[#allocation5] sm:$0xff]
        %v598 = vld [vmem:[#allocation3] sm:$0xff]
        %v599 = vmul.f32 %v598, %v597
        %v600 = vsub.f32 1.0, %v598
        %v601 = vld [vmem:[#allocation2] sm:$0xff]
        %v602 = vmul.f32 %v600, %v601
        %v603 = vadd.f32 %v599, %v602
        %604 = vst [vmem:[#allocation2] sm:$0xff] %v603
        %s605 = scalar_lea.vmem [#allocation3], 8
        %v606 = vld [vmem:[%s605] sm:$0xff]
        %v607 = vmul.f32 %v606, %v603
        %v608 = vsub.f32 1.0, %v606
        %s609 = scalar_lea.vmem [#allocation2], 8
        %v610 = vld [vmem:[%s609] sm:$0xff]
        %v611 = vmul.f32 %v608, %v610
        %v612 = vadd.f32 %v607, %v611
        %613 = vst [vmem:[%s609] sm:$0xff] %v612
        %s614 = scalar_lea.vmem [#allocation3], 16
        %v615 = vld [vmem:[%s614] sm:$0xff]
        %v616 = vmul.f32 %v615, %v612
        %v617 = vsub.f32 1.0, %v615
        %s618 = scalar_lea.vmem [#allocation2], 16
        %v619 = vld [vmem:[%s618] sm:$0xff]
        %v620 = vmul.f32 %v617, %v619
        %v621 = vadd.f32 %v616, %v620
        %622 = vst [vmem:[%s618] sm:$0xff] %v621
        %s623 = scalar_lea.vmem [#allocation3], 24
        %v624 = vld [vmem:[%s623] sm:$0xff]
        %v625 = vmul.f32 %v624, %v621
        %v626 = vsub.f32 1.0, %v624
        %s627 = scalar_lea.vmem [#allocation2], 24
        %v628 = vld [vmem:[%s627] sm:$0xff]
        %v629 = vmul.f32 %v626, %v628
        %v630 = vadd.f32 %v625, %v629
        %631 = vst [vmem:[%s627] sm:$0xff] %v630
        %s632 = scalar_lea.vmem [#allocation3], 32
        %v633 = vld [vmem:[%s632] sm:$0xff]
        %v634 = vmul.f32 %v633, %v630
        %v635 = vsub.f32 1.0, %v633
        %s636 = scalar_lea.vmem [#allocation2], 32
        %v637 = vld [vmem:[%s636] sm:$0xff]
        %v638 = vmul.f32 %v635, %v637
        %v639 = vadd.f32 %v634, %v638
        %640 = vst [vmem:[%s636] sm:$0xff] %v639
        %s641 = scalar_lea.vmem [#allocation3], 40
        %v642 = vld [vmem:[%s641] sm:$0xff]
        %v643 = vmul.f32 %v642, %v639
        %v644 = vsub.f32 1.0, %v642
        %s645 = scalar_lea.vmem [#allocation2], 40
        %v646 = vld [vmem:[%s645] sm:$0xff]
        %v647 = vmul.f32 %v644, %v646
        %v648 = vadd.f32 %v643, %v647
        %649 = vst [vmem:[%s645] sm:$0xff] %v648
        %s650 = scalar_lea.vmem [#allocation3], 48
        %v651 = vld [vmem:[%s650] sm:$0xff]
        %v652 = vmul.f32 %v651, %v648
        %v653 = vsub.f32 1.0, %v651
        %s654 = scalar_lea.vmem [#allocation2], 48
        %v655 = vld [vmem:[%s654] sm:$0xff]
        %v656 = vmul.f32 %v653, %v655
        %v657 = vadd.f32 %v652, %v656
        %658 = vst [vmem:[%s654] sm:$0xff] %v657
        %s659 = scalar_lea.vmem [#allocation3], 56
        %v660 = vld [vmem:[%s659] sm:$0xff]
        %v661 = vmul.f32 %v660, %v657
        %v662 = vsub.f32 1.0, %v660
        %s663 = scalar_lea.vmem [#allocation2], 56
        %v664 = vld [vmem:[%s663] sm:$0xff]
        %v665 = vmul.f32 %v662, %v664
        %v666 = vadd.f32 %v661, %v665
        %667 = vst [vmem:[%s663] sm:$0xff] %v666
        %668 = vst [vmem:[#allocation5] sm:$0xff] %v666
        %v669 = vld [vmem:[#allocation2] sm:$0xff]
        %v670 = vld [vmem:[#allocation2 + $0x8] sm:$0xff]
        %v671 = vld [vmem:[#allocation2 + $0x10] sm:$0xff]
        %v672 = vld [vmem:[#allocation2 + $0x18] sm:$0xff]
        %v673 = vld [vmem:[#allocation2 + $0x20] sm:$0xff]
        %v674 = vld [vmem:[#allocation2 + $0x28] sm:$0xff]
        %v675 = vld [vmem:[#allocation2 + $0x30] sm:$0xff]
        %v676 = vld [vmem:[#allocation2 + $0x38] sm:$0xff]
        %v677 = vpack.c.bf16 %v670, %v669
        %v678 = vpack.c.bf16 %v672, %v671
        %v679 = vpack.c.bf16 %v674, %v673
        %v680 = vpack.c.bf16 %v676, %v675
        %v681 = vld [vmem:[%s3] sm:$0xff]
        %v682 = vld [vmem:[%s3 + $0x8] sm:$0xff]
        %v683 = vld [vmem:[%s3 + $0x10] sm:$0xff]
        %v684 = vld [vmem:[%s3 + $0x18] sm:$0xff]
        %v685 = vld [vmem:[%s3 + $0x20] sm:$0xff]
        %v686 = vld [vmem:[%s3 + $0x28] sm:$0xff]
        %v687 = vld [vmem:[%s3 + $0x30] sm:$0xff]
        %v688 = vld [vmem:[%s3 + $0x38] sm:$0xff]
        %v689 = vld [vmem:[%s3 + $0x40] sm:$0xff]
        %v690 = vld [vmem:[%s3 + $0x48] sm:$0xff]
        %v691 = vld [vmem:[%s3 + $0x50] sm:$0xff]
        %v692 = vld [vmem:[%s3 + $0x58] sm:$0xff]
        %v693 = vld [vmem:[%s3 + $0x60] sm:$0xff]
        %v694 = vld [vmem:[%s3 + $0x68] sm:$0xff]
        %v695 = vld [vmem:[%s3 + $0x70] sm:$0xff]
        %v696 = vld [vmem:[%s3 + $0x78] sm:$0xff]
        %v697 = vld [vmem:[%s3 + $0x80] sm:$0xff]
        %v698 = vld [vmem:[%s3 + $0x88] sm:$0xff]
        %v699 = vld [vmem:[%s3 + $0x90] sm:$0xff]
        %v700 = vld [vmem:[%s3 + $0x98] sm:$0xff]
        %v701 = vld [vmem:[%s3 + $0xa0] sm:$0xff]
        %v702 = vld [vmem:[%s3 + $0xa8] sm:$0xff]
        %v703 = vld [vmem:[%s3 + $0xb0] sm:$0xff]
        %v704 = vld [vmem:[%s3 + $0xb8] sm:$0xff]
        %v705 = vld [vmem:[%s3 + $0xc0] sm:$0xff]
        %v706 = vld [vmem:[%s3 + $0xc8] sm:$0xff]
        %v707 = vld [vmem:[%s3 + $0xd0] sm:$0xff]
        %v708 = vld [vmem:[%s3 + $0xd8] sm:$0xff]
        %v709 = vld [vmem:[%s3 + $0xe0] sm:$0xff]
        %v710 = vld [vmem:[%s3 + $0xe8] sm:$0xff]
        %v711 = vld [vmem:[%s3 + $0xf0] sm:$0xff]
        %v712 = vld [vmem:[%s3 + $0xf8] sm:$0xff]
        %v713 = vld [vmem:[%s4] sm:$0xf]
        %v715 = vlaneseq
        %v716 = vshrl.u32 %v715, 7
        %v717 = vsub.s32 0, %v716
        %v718 = vrot.slane %v713, %v717
        %v719 = vlaneseq
        %v720 = vshrl.u32 %v719, 7
        %v721 = vsub.s32 1, %v720
        %v722 = vrot.slane %v713, %v721
        %v723 = vlaneseq
        %v724 = vshrl.u32 %v723, 7
        %v725 = vsub.s32 2, %v724
        %v726 = vrot.slane %v713, %v725
        %v727 = vlaneseq
        %v728 = vshrl.u32 %v727, 7
        %v729 = vsub.s32 3, %v728
        %v730 = vrot.slane %v713, %v729
        %v767 = vunpack.c.l.b16 %v681
        %v768 = vunpack.c.h.b16 %v681
        %v769 = vunpack.c.l.b16 %v682
        %v770 = vunpack.c.h.b16 %v682
        %v771 = vunpack.c.l.b16 %v683
        %v772 = vunpack.c.h.b16 %v683
        %v773 = vunpack.c.l.b16 %v684
        %v774 = vunpack.c.h.b16 %v684
        %v775 = vunpack.c.l.b16 %v685
        %v776 = vunpack.c.h.b16 %v685
        %v777 = vunpack.c.l.b16 %v686
        %v778 = vunpack.c.h.b16 %v686
        %v779 = vunpack.c.l.b16 %v687
        %v780 = vunpack.c.h.b16 %v687
        %v781 = vunpack.c.l.b16 %v688
        %v782 = vunpack.c.h.b16 %v688
        %v783 = vunpack.c.l.b16 %v689
        %v784 = vunpack.c.h.b16 %v689
        %v785 = vunpack.c.l.b16 %v690
        %v786 = vunpack.c.h.b16 %v690
        %v787 = vunpack.c.l.b16 %v691
        %v788 = vunpack.c.h.b16 %v691
        %v789 = vunpack.c.l.b16 %v692
        %v790 = vunpack.c.h.b16 %v692
        %v791 = vunpack.c.l.b16 %v693
        %v792 = vunpack.c.h.b16 %v693
        %v793 = vunpack.c.l.b16 %v694
        %v794 = vunpack.c.h.b16 %v694
        %v795 = vunpack.c.l.b16 %v695
        %v796 = vunpack.c.h.b16 %v695
        %v797 = vunpack.c.l.b16 %v696
        %v798 = vunpack.c.h.b16 %v696
        %v799 = vunpack.c.l.b16 %v697
        %v800 = vunpack.c.h.b16 %v697
        %v801 = vunpack.c.l.b16 %v698
        %v802 = vunpack.c.h.b16 %v698
        %v803 = vunpack.c.l.b16 %v699
        %v804 = vunpack.c.h.b16 %v699
        %v805 = vunpack.c.l.b16 %v700
        %v806 = vunpack.c.h.b16 %v700
        %v807 = vunpack.c.l.b16 %v701
        %v808 = vunpack.c.h.b16 %v701
        %v809 = vunpack.c.l.b16 %v702
        %v810 = vunpack.c.h.b16 %v702
        %v811 = vunpack.c.l.b16 %v703
        %v812 = vunpack.c.h.b16 %v703
        %v813 = vunpack.c.l.b16 %v704
        %v814 = vunpack.c.h.b16 %v704
        %v815 = vunpack.c.l.b16 %v705
        %v816 = vunpack.c.h.b16 %v705
        %v817 = vunpack.c.l.b16 %v706
        %v818 = vunpack.c.h.b16 %v706
        %v819 = vunpack.c.l.b16 %v707
        %v820 = vunpack.c.h.b16 %v707
        %v821 = vunpack.c.l.b16 %v708
        %v822 = vunpack.c.h.b16 %v708
        %v823 = vunpack.c.l.b16 %v709
        %v824 = vunpack.c.h.b16 %v709
        %v825 = vunpack.c.l.b16 %v710
        %v826 = vunpack.c.h.b16 %v710
        %v827 = vunpack.c.l.b16 %v711
        %v828 = vunpack.c.h.b16 %v711
        %v829 = vunpack.c.l.b16 %v712
        %v830 = vunpack.c.h.b16 %v712
        %v831 = vpack.c.b16 %v771, %v767
        %v832 = vpack.c.b16 %v772, %v768
        %v833 = vpack.c.b16 %v773, %v769
        %v834 = vpack.c.b16 %v774, %v770
        %v835 = vpack.c.b16 %v779, %v775
        %v836 = vpack.c.b16 %v780, %v776
        %v837 = vpack.c.b16 %v781, %v777
        %v838 = vpack.c.b16 %v782, %v778
        %v839 = vpack.c.b16 %v787, %v783
        %v840 = vpack.c.b16 %v788, %v784
        %v841 = vpack.c.b16 %v789, %v785
        %v842 = vpack.c.b16 %v790, %v786
        %v843 = vpack.c.b16 %v795, %v791
        %v844 = vpack.c.b16 %v796, %v792
        %v845 = vpack.c.b16 %v797, %v793
        %v846 = vpack.c.b16 %v798, %v794
        %v847 = vpack.c.b16 %v803, %v799
        %v848 = vpack.c.b16 %v804, %v800
        %v849 = vpack.c.b16 %v805, %v801
        %v850 = vpack.c.b16 %v806, %v802
        %v851 = vpack.c.b16 %v811, %v807
        %v852 = vpack.c.b16 %v812, %v808
        %v853 = vpack.c.b16 %v813, %v809
        %v854 = vpack.c.b16 %v814, %v810
        %v855 = vpack.c.b16 %v819, %v815
        %v856 = vpack.c.b16 %v820, %v816
        %v857 = vpack.c.b16 %v821, %v817
        %v858 = vpack.c.b16 %v822, %v818
        %v859 = vpack.c.b16 %v827, %v823
        %v860 = vpack.c.b16 %v828, %v824
        %v861 = vpack.c.b16 %v829, %v825
        %v862 = vpack.c.b16 %v830, %v826
        %895 = vmatprep.subr.bf16.mxu0 %v832
        %896 = vmatpush1.bf16.msra.mxu0 %v831
        %897 = vmatprep.subr.bf16.mxu0 %v836
        %898 = vmatpush1.bf16.msra.mxu0 %v835
        %899 = vmatprep.subr.bf16.mxu0 %v840
        %900 = vmatpush1.bf16.msra.mxu0 %v839
        %901 = vmatprep.subr.bf16.mxu0 %v844
        %902 = vmatpush1.bf16.msra.mxu0 %v843
        %903 = vmatprep.subr.bf16.mxu0 %v848
        %904 = vmatpush1.bf16.msra.mxu0 %v847
        %905 = vmatprep.subr.bf16.mxu0 %v852
        %906 = vmatpush1.bf16.msra.mxu0 %v851
        %907 = vmatprep.subr.bf16.mxu0 %v856
        %908 = vmatpush1.bf16.msra.mxu0 %v855
        %909 = vmatprep.subr.bf16.mxu0 %v860
        %910 = vmatpush1.bf16.msra.mxu0 %v859
        %911 = vmatprep.subr.bf16.mxu0 0
        %912 = vmatpush1.bf16.msra.mxu0 0
        %913 = vmatprep.subr.bf16.mxu0 0
        %914 = vmatpush1.bf16.msra.mxu0 0
        %915 = vmatprep.subr.bf16.mxu0 0
        %916 = vmatpush1.bf16.msra.mxu0 0
        %917 = vmatprep.subr.bf16.mxu0 0
        %918 = vmatpush1.bf16.msra.mxu0 0
        %919 = vmatprep.subr.bf16.mxu0 0
        %920 = vmatpush1.bf16.msra.mxu0 0
        %921 = vmatprep.subr.bf16.mxu0 0
        %922 = vmatpush1.bf16.msra.mxu0 0
        %923 = vmatprep.subr.bf16.mxu0 0
        %924 = vmatpush1.bf16.msra.mxu0 0
        %925 = vmatprep.subr.bf16.mxu0 0
        %926 = vmatpush1.bf16.msra.mxu0 0
        %927 = vmatprep.mubr.bf16.mxu0 0
        %928 = vmatmul.mubr.bf16.gmra.mrb[0].mxu0 %v677
        %v929 = vpop.f32.mrb[0].mxu0
        %v930 = vadd.f32 %v718, %v929
        %v931 = vpop.f32.mrb[0].mxu0
        %v932 = vadd.f32 %v722, %v931
        %v933 = vpop.f32.mrb[0].mxu0
        %v934 = vadd.f32 %v718, %v933
        %v935 = vpop.f32.mrb[0].mxu0
        %v936 = vadd.f32 %v722, %v935
        %937 = vmatprep.mubr.bf16.mxu0 0
        %938 = vmatmul.mubr.bf16.gmra.mrb[0].mxu0 %v678
        %v939 = vpop.f32.mrb[0].mxu0
        %v940 = vadd.f32 %v718, %v939
        %v941 = vpop.f32.mrb[0].mxu0
        %v942 = vadd.f32 %v722, %v941
        %v943 = vpop.f32.mrb[0].mxu0
        %v944 = vadd.f32 %v718, %v943
        %v945 = vpop.f32.mrb[0].mxu0
        %v946 = vadd.f32 %v722, %v945
        %947 = vmatprep.mubr.bf16.mxu0 0
        %948 = vmatmul.mubr.bf16.gmra.mrb[0].mxu0 %v679
        %v949 = vpop.f32.mrb[0].mxu0
        %v950 = vadd.f32 %v718, %v949
        %v951 = vpop.f32.mrb[0].mxu0
        %v952 = vadd.f32 %v722, %v951
        %v953 = vpop.f32.mrb[0].mxu0
        %v954 = vadd.f32 %v718, %v953
        %v955 = vpop.f32.mrb[0].mxu0
        %v956 = vadd.f32 %v722, %v955
        %957 = vmatprep.mubr.bf16.mxu0 0
        %958 = vmatmul.mubr.bf16.gmra.mrb[0].mxu0 %v680
        %v959 = vpop.f32.mrb[0].mxu0
        %v960 = vadd.f32 %v718, %v959
        %v961 = vpop.f32.mrb[0].mxu0
        %v962 = vadd.f32 %v722, %v961
        %v963 = vpop.f32.mrb[0].mxu0
        %v964 = vadd.f32 %v718, %v963
        %v965 = vpop.f32.mrb[0].mxu0
        %v966 = vadd.f32 %v722, %v965
        %967 = vdwg.mxu0
        %968 = vmatprep.subr.bf16.mxu0 %v834
        %969 = vmatpush1.bf16.msra.mxu0 %v833
        %970 = vmatprep.subr.bf16.mxu0 %v838
        %971 = vmatpush1.bf16.msra.mxu0 %v837
        %972 = vmatprep.subr.bf16.mxu0 %v842
        %973 = vmatpush1.bf16.msra.mxu0 %v841
        %974 = vmatprep.subr.bf16.mxu0 %v846
        %975 = vmatpush1.bf16.msra.mxu0 %v845
        %976 = vmatprep.subr.bf16.mxu0 %v850
        %977 = vmatpush1.bf16.msra.mxu0 %v849
        %978 = vmatprep.subr.bf16.mxu0 %v854
        %979 = vmatpush1.bf16.msra.mxu0 %v853
        %980 = vmatprep.subr.bf16.mxu0 %v858
        %981 = vmatpush1.bf16.msra.mxu0 %v857
        %982 = vmatprep.subr.bf16.mxu0 %v862
        %983 = vmatpush1.bf16.msra.mxu0 %v861
        %984 = vmatprep.subr.bf16.mxu0 0
        %985 = vmatpush1.bf16.msra.mxu0 0
        %986 = vmatprep.subr.bf16.mxu0 0
        %987 = vmatpush1.bf16.msra.mxu0 0
        %988 = vmatprep.subr.bf16.mxu0 0
        %989 = vmatpush1.bf16.msra.mxu0 0
        %990 = vmatprep.subr.bf16.mxu0 0
        %991 = vmatpush1.bf16.msra.mxu0 0
        %992 = vmatprep.subr.bf16.mxu0 0
        %993 = vmatpush1.bf16.msra.mxu0 0
        %994 = vmatprep.subr.bf16.mxu0 0
        %995 = vmatpush1.bf16.msra.mxu0 0
        %996 = vmatprep.subr.bf16.mxu0 0
        %997 = vmatpush1.bf16.msra.mxu0 0
        %998 = vmatprep.subr.bf16.mxu0 0
        %999 = vmatpush1.bf16.msra.mxu0 0
        %1000 = vmatprep.mubr.bf16.mxu0 0
        %1001 = vmatmul.mubr.bf16.gmra.mrb[0].mxu0 %v677
        %v1002 = vpop.f32.mrb[0].mxu0
        %v1003 = vadd.f32 %v726, %v1002
        %v1004 = vpop.f32.mrb[0].mxu0
        %v1005 = vadd.f32 %v730, %v1004
        %v1006 = vpop.f32.mrb[0].mxu0
        %v1007 = vadd.f32 %v726, %v1006
        %v1008 = vpop.f32.mrb[0].mxu0
        %v1009 = vadd.f32 %v730, %v1008
        %1010 = vmatprep.mubr.bf16.mxu0 0
        %1011 = vmatmul.mubr.bf16.gmra.mrb[0].mxu0 %v678
        %v1012 = vpop.f32.mrb[0].mxu0
        %v1013 = vadd.f32 %v726, %v1012
        %v1014 = vpop.f32.mrb[0].mxu0
        %v1015 = vadd.f32 %v730, %v1014
        %v1016 = vpop.f32.mrb[0].mxu0
        %v1017 = vadd.f32 %v726, %v1016
        %v1018 = vpop.f32.mrb[0].mxu0
        %v1019 = vadd.f32 %v730, %v1018
        %1020 = vmatprep.mubr.bf16.mxu0 0
        %1021 = vmatmul.mubr.bf16.gmra.mrb[0].mxu0 %v679
        %v1022 = vpop.f32.mrb[0].mxu0
        %v1023 = vadd.f32 %v726, %v1022
        %v1024 = vpop.f32.mrb[0].mxu0
        %v1025 = vadd.f32 %v730, %v1024
        %v1026 = vpop.f32.mrb[0].mxu0
        %v1027 = vadd.f32 %v726, %v1026
        %v1028 = vpop.f32.mrb[0].mxu0
        %v1029 = vadd.f32 %v730, %v1028
        %1030 = vmatprep.mubr.bf16.mxu0 0
        %1031 = vmatmul.mubr.bf16.gmra.mrb[0].mxu0 %v680
        %v1032 = vpop.f32.mrb[0].mxu0
        %v1033 = vadd.f32 %v726, %v1032
        %v1034 = vpop.f32.mrb[0].mxu0
        %v1035 = vadd.f32 %v730, %v1034
        %v1036 = vpop.f32.mrb[0].mxu0
        %v1037 = vadd.f32 %v726, %v1036
        %v1038 = vpop.f32.mrb[0].mxu0
        %v1039 = vadd.f32 %v730, %v1038
        %1040 = vdwg.mxu0
        %v1041 = vxor.u32 %v930, 2147483648
        %v1042 = vxor.u32 %v934, 2147483648
        %v1043 = vxor.u32 %v940, 2147483648
        %v1044 = vxor.u32 %v944, 2147483648
        %v1045 = vxor.u32 %v950, 2147483648
        %v1046 = vxor.u32 %v954, 2147483648
        %v1047 = vxor.u32 %v960, 2147483648
        %v1048 = vxor.u32 %v964, 2147483648
        %v1049 = vmul.f32 %v1041, 1.442695
        %v1050 = vpow.pop %v1049
        %v1051 = vmul.f32 %v1042, 1.442695
        %v1052 = vpow.pop %v1051
        %v1053 = vmul.f32 %v1043, 1.442695
        %v1054 = vpow.pop %v1053
        %v1055 = vmul.f32 %v1044, 1.442695
        %v1056 = vpow.pop %v1055
        %v1057 = vmul.f32 %v1045, 1.442695
        %v1058 = vpow.pop %v1057
        %v1059 = vmul.f32 %v1046, 1.442695
        %v1060 = vpow.pop %v1059
        %v1061 = vmul.f32 %v1047, 1.442695
        %v1062 = vpow.pop %v1061
        %v1063 = vmul.f32 %v1048, 1.442695
        %v1064 = vpow.pop %v1063
        %v1065 = vadd.f32 %v1050, 1.0
        %v1066 = vadd.f32 %v1052, 1.0
        %v1067 = vadd.f32 %v1054, 1.0
        %v1068 = vadd.f32 %v1056, 1.0
        %v1069 = vadd.f32 %v1058, 1.0
        %v1070 = vadd.f32 %v1060, 1.0
        %v1071 = vadd.f32 %v1062, 1.0
        %v1072 = vadd.f32 %v1064, 1.0
        %v1073 = vrcp.pop %v1065
        %v1074 = vmul.f32 1.0, %v1073
        %v1075 = vrcp.pop %v1066
        %v1076 = vmul.f32 1.0, %v1075
        %v1077 = vrcp.pop %v1067
        %v1078 = vmul.f32 1.0, %v1077
        %v1079 = vrcp.pop %v1068
        %v1080 = vmul.f32 1.0, %v1079
        %v1081 = vrcp.pop %v1069
        %v1082 = vmul.f32 1.0, %v1081
        %v1083 = vrcp.pop %v1070
        %v1084 = vmul.f32 1.0, %v1083
        %v1085 = vrcp.pop %v1071
        %v1086 = vmul.f32 1.0, %v1085
        %v1087 = vrcp.pop %v1072
        %v1088 = vmul.f32 1.0, %v1087
        %1089 = vst [vmem:[#allocation3] sm:$0xff] %v1074
        %1090 = vst [vmem:[#allocation3 + $0x8] sm:$0xff] %v1076
        %1091 = vst [vmem:[#allocation3 + $0x10] sm:$0xff] %v1078
        %1092 = vst [vmem:[#allocation3 + $0x18] sm:$0xff] %v1080
        %1093 = vst [vmem:[#allocation3 + $0x20] sm:$0xff] %v1082
        %1094 = vst [vmem:[#allocation3 + $0x28] sm:$0xff] %v1084
        %1095 = vst [vmem:[#allocation3 + $0x30] sm:$0xff] %v1086
        %1096 = vst [vmem:[#allocation3 + $0x38] sm:$0xff] %v1088
        %v1097 = vxor.u32 %v932, 2147483648
        %v1098 = vxor.u32 %v936, 2147483648
        %v1099 = vxor.u32 %v942, 2147483648
        %v1100 = vxor.u32 %v946, 2147483648
        %v1101 = vxor.u32 %v952, 2147483648
        %v1102 = vxor.u32 %v956, 2147483648
        %v1103 = vxor.u32 %v962, 2147483648
        %v1104 = vxor.u32 %v966, 2147483648
        %v1105 = vmul.f32 %v1097, 1.442695
        %v1106 = vpow.pop %v1105
        %v1107 = vmul.f32 %v1098, 1.442695
        %v1108 = vpow.pop %v1107
        %v1109 = vmul.f32 %v1099, 1.442695
        %v1110 = vpow.pop %v1109
        %v1111 = vmul.f32 %v1100, 1.442695
        %v1112 = vpow.pop %v1111
        %v1113 = vmul.f32 %v1101, 1.442695
        %v1114 = vpow.pop %v1113
        %v1115 = vmul.f32 %v1102, 1.442695
        %v1116 = vpow.pop %v1115
        %v1117 = vmul.f32 %v1103, 1.442695
        %v1118 = vpow.pop %v1117
        %v1119 = vmul.f32 %v1104, 1.442695
        %v1120 = vpow.pop %v1119
        %v1121 = vadd.f32 %v1106, 1.0
        %v1122 = vadd.f32 %v1108, 1.0
        %v1123 = vadd.f32 %v1110, 1.0
        %v1124 = vadd.f32 %v1112, 1.0
        %v1125 = vadd.f32 %v1114, 1.0
        %v1126 = vadd.f32 %v1116, 1.0
        %v1127 = vadd.f32 %v1118, 1.0
        %v1128 = vadd.f32 %v1120, 1.0
        %v1129 = vrcp.pop %v1121
        %v1130 = vmul.f32 1.0, %v1129
        %v1131 = vrcp.pop %v1122
        %v1132 = vmul.f32 1.0, %v1131
        %v1133 = vrcp.pop %v1123
        %v1134 = vmul.f32 1.0, %v1133
        %v1135 = vrcp.pop %v1124
        %v1136 = vmul.f32 1.0, %v1135
        %v1137 = vrcp.pop %v1125
        %v1138 = vmul.f32 1.0, %v1137
        %v1139 = vrcp.pop %v1126
        %v1140 = vmul.f32 1.0, %v1139
        %v1141 = vrcp.pop %v1127
        %v1142 = vmul.f32 1.0, %v1141
        %v1143 = vrcp.pop %v1128
        %v1144 = vmul.f32 1.0, %v1143
        %v1145 = vtanh.pop %v1005
        %v1146 = vtanh.pop %v1009
        %v1147 = vtanh.pop %v1015
        %v1148 = vtanh.pop %v1019
        %v1149 = vtanh.pop %v1025
        %v1150 = vtanh.pop %v1029
        %v1151 = vtanh.pop %v1035
        %v1152 = vtanh.pop %v1039
        %v1153 = vmul.f32 %v1130, %v1145
        %v1154 = vmul.f32 %v1132, %v1146
        %v1155 = vmul.f32 %v1134, %v1147
        %v1156 = vmul.f32 %v1136, %v1148
        %v1157 = vmul.f32 %v1138, %v1149
        %v1158 = vmul.f32 %v1140, %v1150
        %v1159 = vmul.f32 %v1142, %v1151
        %v1160 = vmul.f32 %v1144, %v1152
        %1161 = vst [vmem:[#allocation4] sm:$0xff] %v1153
        %1162 = vst [vmem:[#allocation4 + $0x8] sm:$0xff] %v1154
        %1163 = vst [vmem:[#allocation4 + $0x10] sm:$0xff] %v1155
        %1164 = vst [vmem:[#allocation4 + $0x18] sm:$0xff] %v1156
        %1165 = vst [vmem:[#allocation4 + $0x20] sm:$0xff] %v1157
        %1166 = vst [vmem:[#allocation4 + $0x28] sm:$0xff] %v1158
        %1167 = vst [vmem:[#allocation4 + $0x30] sm:$0xff] %v1159
        %1168 = vst [vmem:[#allocation4 + $0x38] sm:$0xff] %v1160
        %v1169 = vxor.u32 %v1003, 2147483648
        %v1170 = vxor.u32 %v1007, 2147483648
        %v1171 = vxor.u32 %v1013, 2147483648
        %v1172 = vxor.u32 %v1017, 2147483648
        %v1173 = vxor.u32 %v1023, 2147483648
        %v1174 = vxor.u32 %v1027, 2147483648
        %v1175 = vxor.u32 %v1033, 2147483648
        %v1176 = vxor.u32 %v1037, 2147483648
        %v1177 = vmul.f32 %v1169, 1.442695
        %v1178 = vpow.pop %v1177
        %v1179 = vmul.f32 %v1170, 1.442695
        %v1180 = vpow.pop %v1179
        %v1181 = vmul.f32 %v1171, 1.442695
        %v1182 = vpow.pop %v1181
        %v1183 = vmul.f32 %v1172, 1.442695
        %v1184 = vpow.pop %v1183
        %v1185 = vmul.f32 %v1173, 1.442695
        %v1186 = vpow.pop %v1185
        %v1187 = vmul.f32 %v1174, 1.442695
        %v1188 = vpow.pop %v1187
        %v1189 = vmul.f32 %v1175, 1.442695
        %v1190 = vpow.pop %v1189
        %v1191 = vmul.f32 %v1176, 1.442695
        %v1192 = vpow.pop %v1191
        %v1193 = vadd.f32 %v1178, 1.0
        %v1194 = vadd.f32 %v1180, 1.0
        %v1195 = vadd.f32 %v1182, 1.0
        %v1196 = vadd.f32 %v1184, 1.0
        %v1197 = vadd.f32 %v1186, 1.0
        %v1198 = vadd.f32 %v1188, 1.0
        %v1199 = vadd.f32 %v1190, 1.0
        %v1200 = vadd.f32 %v1192, 1.0
        %v1201 = vrcp.pop %v1193
        %v1202 = vmul.f32 1.0, %v1201
        %v1203 = vrcp.pop %v1194
        %v1204 = vmul.f32 1.0, %v1203
        %v1205 = vrcp.pop %v1195
        %v1206 = vmul.f32 1.0, %v1205
        %v1207 = vrcp.pop %v1196
        %v1208 = vmul.f32 1.0, %v1207
        %v1209 = vrcp.pop %v1197
        %v1210 = vmul.f32 1.0, %v1209
        %v1211 = vrcp.pop %v1198
        %v1212 = vmul.f32 1.0, %v1211
        %v1213 = vrcp.pop %v1199
        %v1214 = vmul.f32 1.0, %v1213
        %v1215 = vrcp.pop %v1200
        %v1216 = vmul.f32 1.0, %v1215
        %1217 = vst [vmem:[#allocation2] sm:$0xff] %v1202
        %1218 = vst [vmem:[#allocation2 + $0x8] sm:$0xff] %v1204
        %1219 = vst [vmem:[#allocation2 + $0x10] sm:$0xff] %v1206
        %1220 = vst [vmem:[#allocation2 + $0x18] sm:$0xff] %v1208
        %1221 = vst [vmem:[#allocation2 + $0x20] sm:$0xff] %v1210
        %1222 = vst [vmem:[#allocation2 + $0x28] sm:$0xff] %v1212
        %1223 = vst [vmem:[#allocation2 + $0x30] sm:$0xff] %v1214
        %1224 = vst [vmem:[#allocation2 + $0x38] sm:$0xff] %v1216
        %v1225 = vld [vmem:[#allocation6] sm:$0xff]
        %v1226 = vld [vmem:[#allocation3] sm:$0xff]
        %v1227 = vmul.f32 %v1226, %v1225
        %v1228 = vsub.f32 1.0, %v1226
        %v1229 = vld [vmem:[#allocation4] sm:$0xff]
        %v1230 = vmul.f32 %v1228, %v1229
        %v1231 = vadd.f32 %v1227, %v1230
        %1232 = vst [vmem:[#allocation4] sm:$0xff] %v1231
        %v1233 = vld [vmem:[%s605] sm:$0xff]
        %v1234 = vmul.f32 %v1233, %v1231
        %v1235 = vsub.f32 1.0, %v1233
        %s1236 = scalar_lea.vmem [#allocation4], 8
        %v1237 = vld [vmem:[%s1236] sm:$0xff]
        %v1238 = vmul.f32 %v1235, %v1237
        %v1239 = vadd.f32 %v1234, %v1238
        %1240 = vst [vmem:[%s1236] sm:$0xff] %v1239
        %v1241 = vld [vmem:[%s614] sm:$0xff]
        %v1242 = vmul.f32 %v1241, %v1239
        %v1243 = vsub.f32 1.0, %v1241
        %s1244 = scalar_lea.vmem [#allocation4], 16
        %v1245 = vld [vmem:[%s1244] sm:$0xff]
        %v1246 = vmul.f32 %v1243, %v1245
        %v1247 = vadd.f32 %v1242, %v1246
        %1248 = vst [vmem:[%s1244] sm:$0xff] %v1247
        %v1249 = vld [vmem:[%s623] sm:$0xff]
        %v1250 = vmul.f32 %v1249, %v1247
        %v1251 = vsub.f32 1.0, %v1249
        %s1252 = scalar_lea.vmem [#allocation4], 24
        %v1253 = vld [vmem:[%s1252] sm:$0xff]
        %v1254 = vmul.f32 %v1251, %v1253
        %v1255 = vadd.f32 %v1250, %v1254
        %1256 = vst [vmem:[%s1252] sm:$0xff] %v1255
        %v1257 = vld [vmem:[%s632] sm:$0xff]
        %v1258 = vmul.f32 %v1257, %v1255
        %v1259 = vsub.f32 1.0, %v1257
        %s1260 = scalar_lea.vmem [#allocation4], 32
        %v1261 = vld [vmem:[%s1260] sm:$0xff]
        %v1262 = vmul.f32 %v1259, %v1261
        %v1263 = vadd.f32 %v1258, %v1262
        %1264 = vst [vmem:[%s1260] sm:$0xff] %v1263
        %v1265 = vld [vmem:[%s641] sm:$0xff]
        %v1266 = vmul.f32 %v1265, %v1263
        %v1267 = vsub.f32 1.0, %v1265
        %s1268 = scalar_lea.vmem [#allocation4], 40
        %v1269 = vld [vmem:[%s1268] sm:$0xff]
        %v1270 = vmul.f32 %v1267, %v1269
        %v1271 = vadd.f32 %v1266, %v1270
        %1272 = vst [vmem:[%s1268] sm:$0xff] %v1271
        %v1273 = vld [vmem:[%s650] sm:$0xff]
        %v1274 = vmul.f32 %v1273, %v1271
        %v1275 = vsub.f32 1.0, %v1273
        %s1276 = scalar_lea.vmem [#allocation4], 48
        %v1277 = vld [vmem:[%s1276] sm:$0xff]
        %v1278 = vmul.f32 %v1275, %v1277
        %v1279 = vadd.f32 %v1274, %v1278
        %1280 = vst [vmem:[%s1276] sm:$0xff] %v1279
        %v1281 = vld [vmem:[%s659] sm:$0xff]
        %v1282 = vmul.f32 %v1281, %v1279
        %v1283 = vsub.f32 1.0, %v1281
        %s1284 = scalar_lea.vmem [#allocation4], 56
        %v1285 = vld [vmem:[%s1284] sm:$0xff]
        %v1286 = vmul.f32 %v1283, %v1285
        %v1287 = vadd.f32 %v1282, %v1286
        %1288 = vst [vmem:[%s1284] sm:$0xff] %v1287
        %1289 = vst [vmem:[#allocation6] sm:$0xff] %v1287
        %v1290 = vld [vmem:[#allocation4] sm:$0xff]
        %v1291 = vld [vmem:[#allocation4 + $0x8] sm:$0xff]
        %v1292 = vld [vmem:[#allocation4 + $0x10] sm:$0xff]
        %v1293 = vld [vmem:[#allocation4 + $0x18] sm:$0xff]
        %v1294 = vld [vmem:[#allocation4 + $0x20] sm:$0xff]
        %v1295 = vld [vmem:[#allocation4 + $0x28] sm:$0xff]
        %v1296 = vld [vmem:[#allocation4 + $0x30] sm:$0xff]
        %v1297 = vld [vmem:[#allocation4 + $0x38] sm:$0xff]
        %v1298 = vld [vmem:[#allocation2] sm:$0xff]
        %v1299 = vld [vmem:[#allocation2 + $0x8] sm:$0xff]
        %v1300 = vld [vmem:[#allocation2 + $0x10] sm:$0xff]
        %v1301 = vld [vmem:[#allocation2 + $0x18] sm:$0xff]
        %v1302 = vld [vmem:[#allocation2 + $0x20] sm:$0xff]
        %v1303 = vld [vmem:[#allocation2 + $0x28] sm:$0xff]
        %v1304 = vld [vmem:[#allocation2 + $0x30] sm:$0xff]
        %v1305 = vld [vmem:[#allocation2 + $0x38] sm:$0xff]
        %v1306 = vmul.f32 %v1290, %v1298
        %v1307 = vmul.f32 %v1291, %v1299
        %v1308 = vmul.f32 %v1292, %v1300
        %v1309 = vmul.f32 %v1293, %v1301
        %v1310 = vmul.f32 %v1294, %v1302
        %v1311 = vmul.f32 %v1295, %v1303
        %v1312 = vmul.f32 %v1296, %v1304
        %v1313 = vmul.f32 %v1297, %v1305
        %v1314 = vpack.c.bf16 %v1307, %v1306
        %v1315 = vpack.c.bf16 %v1309, %v1308
        %v1316 = vpack.c.bf16 %v1311, %v1310
        %v1317 = vpack.c.bf16 %v1313, %v1312
        %v1318 = vld [vmem:[%s5] sm:$0xf]
        %v1319 = vld [vmem:[%s5 + $0x4] sm:$0xf]
        %v1320 = vld [vmem:[%s5 + $0x8] sm:$0xf]
        %v1321 = vld [vmem:[%s5 + $0xc] sm:$0xf]
        %v1322 = vld [vmem:[%s5 + $0x10] sm:$0xf]
        %v1323 = vld [vmem:[%s5 + $0x14] sm:$0xf]
        %v1324 = vld [vmem:[%s5 + $0x18] sm:$0xf]
        %v1325 = vld [vmem:[%s5 + $0x1c] sm:$0xf]
        %v1326 = vld [vmem:[%s5 + $0x20] sm:$0xf]
        %v1327 = vld [vmem:[%s5 + $0x24] sm:$0xf]
        %v1328 = vld [vmem:[%s5 + $0x28] sm:$0xf]
        %v1329 = vld [vmem:[%s5 + $0x2c] sm:$0xf]
        %v1330 = vld [vmem:[%s5 + $0x30] sm:$0xf]
        %v1331 = vld [vmem:[%s5 + $0x34] sm:$0xf]
        %v1332 = vld [vmem:[%s5 + $0x38] sm:$0xf]
        %v1333 = vld [vmem:[%s5 + $0x3c] sm:$0xf]
        %v1334 = vld [vmem:[%s6] sm:$0x1]
        %v1336 = vlaneseq
        %v1337 = vshrl.u32 %v1336, 7
        %v1338 = vsub.s32 0, %v1337
        %v1339 = vrot.slane %v1334, %v1338
        %v1357 = vunpack.c.l.b16 %v1318
        %v1358 = vunpack.c.l.b16 %v1319
        %v1359 = vunpack.c.l.b16 %v1320
        %v1360 = vunpack.c.l.b16 %v1321
        %v1361 = vunpack.c.l.b16 %v1322
        %v1362 = vunpack.c.l.b16 %v1323
        %v1363 = vunpack.c.l.b16 %v1324
        %v1364 = vunpack.c.l.b16 %v1325
        %v1365 = vunpack.c.l.b16 %v1326
        %v1366 = vunpack.c.l.b16 %v1327
        %v1367 = vunpack.c.l.b16 %v1328
        %v1368 = vunpack.c.l.b16 %v1329
        %v1369 = vunpack.c.l.b16 %v1330
        %v1370 = vunpack.c.l.b16 %v1331
        %v1371 = vunpack.c.l.b16 %v1332
        %v1372 = vunpack.c.l.b16 %v1333
        %v1373 = vpack.c.b16 %v1358, %v1357
        %v1374 = vpack.c.b16 %v1360, %v1359
        %v1375 = vpack.c.b16 %v1362, %v1361
        %v1376 = vpack.c.b16 %v1364, %v1363
        %v1377 = vpack.c.b16 %v1366, %v1365
        %v1378 = vpack.c.b16 %v1368, %v1367
        %v1379 = vpack.c.b16 %v1370, %v1369
        %v1380 = vpack.c.b16 %v1372, %v1371
        %1389 = vmatprep.subr.bf16.mxu0 0
        %1390 = vmatpush1.bf16.msra.mxu0 %v1373
        %1391 = vmatprep.subr.bf16.mxu0 0
        %1392 = vmatpush1.bf16.msra.mxu0 %v1374
        %1393 = vmatprep.subr.bf16.mxu0 0
        %1394 = vmatpush1.bf16.msra.mxu0 %v1375
        %1395 = vmatprep.subr.bf16.mxu0 0
        %1396 = vmatpush1.bf16.msra.mxu0 %v1376
        %1397 = vmatprep.subr.bf16.mxu0 0
        %1398 = vmatpush1.bf16.msra.mxu0 %v1377
        %1399 = vmatprep.subr.bf16.mxu0 0
        %1400 = vmatpush1.bf16.msra.mxu0 %v1378
        %1401 = vmatprep.subr.bf16.mxu0 0
        %1402 = vmatpush1.bf16.msra.mxu0 %v1379
        %1403 = vmatprep.subr.bf16.mxu0 0
        %1404 = vmatpush1.bf16.msra.mxu0 %v1380
        %1405 = vmatprep.subr.bf16.mxu0 0
        %1406 = vmatpush1.bf16.msra.mxu0 0
        %1407 = vmatprep.subr.bf16.mxu0 0
        %1408 = vmatpush1.bf16.msra.mxu0 0
        %1409 = vmatprep.subr.bf16.mxu0 0
        %1410 = vmatpush1.bf16.msra.mxu0 0
        %1411 = vmatprep.subr.bf16.mxu0 0
        %1412 = vmatpush1.bf16.msra.mxu0 0
        %1413 = vmatprep.subr.bf16.mxu0 0
        %1414 = vmatpush1.bf16.msra.mxu0 0
        %1415 = vmatprep.subr.bf16.mxu0 0
        %1416 = vmatpush1.bf16.msra.mxu0 0
        %1417 = vmatprep.subr.bf16.mxu0 0
        %1418 = vmatpush1.bf16.msra.mxu0 0
        %1419 = vmatprep.subr.bf16.mxu0 0
        %1420 = vmatpush1.bf16.msra.mxu0 0
        %1421 = vmatprep.mubr.bf16.mxu0 0
        %1422 = vmatmul.mubr.bf16.gmra.mrb[0].mxu0 %v1314
        %v1423 = vpop.f32.mrb[0].mxu0
        %v1424 = vadd.f32 %v1339, %v1423
        %v1425 = vpop.f32.mrb[0].mxu0
        %v1426 = vpop.f32.mrb[0].mxu0
        %v1427 = vadd.f32 %v1339, %v1426
        %v1428 = vpop.f32.mrb[0].mxu0
        %1429 = vmatprep.mubr.bf16.mxu0 0
        %1430 = vmatmul.mubr.bf16.gmra.mrb[0].mxu0 %v1315
        %v1431 = vpop.f32.mrb[0].mxu0
        %v1432 = vadd.f32 %v1339, %v1431
        %v1433 = vpop.f32.mrb[0].mxu0
        %v1434 = vpop.f32.mrb[0].mxu0
        %v1435 = vadd.f32 %v1339, %v1434
        %v1436 = vpop.f32.mrb[0].mxu0
        %1437 = vmatprep.mubr.bf16.mxu0 0
        %1438 = vmatmul.mubr.bf16.gmra.mrb[0].mxu0 %v1316
        %v1439 = vpop.f32.mrb[0].mxu0
        %v1440 = vadd.f32 %v1339, %v1439
        %v1441 = vpop.f32.mrb[0].mxu0
        %v1442 = vpop.f32.mrb[0].mxu0
        %v1443 = vadd.f32 %v1339, %v1442
        %v1444 = vpop.f32.mrb[0].mxu0
        %1445 = vmatprep.mubr.bf16.mxu0 0
        %1446 = vmatmul.mubr.bf16.gmra.mrb[0].mxu0 %v1317
        %v1447 = vpop.f32.mrb[0].mxu0
        %v1448 = vadd.f32 %v1339, %v1447
        %v1449 = vpop.f32.mrb[0].mxu0
        %v1450 = vpop.f32.mrb[0].mxu0
        %v1451 = vadd.f32 %v1339, %v1450
        %v1452 = vpop.f32.mrb[0].mxu0
        %1453 = vdwg.mxu0
        %1454 = vst [vmem:[%s381] sm:$0xff] %v1424
        %1455 = vst [vmem:[%s381 + $0x8] sm:$0xff] %v1427
        %1456 = vst [vmem:[%s381 + $0x10] sm:$0xff] %v1432
        %1457 = vst [vmem:[%s381 + $0x18] sm:$0xff] %v1435
        %1458 = vst [vmem:[%s381 + $0x20] sm:$0xff] %v1440
        %1459 = vst [vmem:[%s381 + $0x28] sm:$0xff] %v1443
        %1460 = vst [vmem:[%s381 + $0x30] sm:$0xff] %v1448
        %1461 = vst [vmem:[%s381 + $0x38] sm:$0xff] %v1451
        // Predicated region
        $region91: #{gilr_lstm_forward.1} parent=81 // pred_check
          %p1462 = pneg %p397
        $region92: #{gilr_lstm_forward.1} parent=81 // pred_check_branch
          %1464 = sbr.rel (%p1462) target = $region94
        $region93: #{gilr_lstm_forward.1} parent=81 // pred_region
          %1465 = vst [vmem:[%s395] sm:$0xff] %v666
          %1466 = vst [vmem:[%s395 + $0x8] sm:$0xff] %v1287
        $region94: #{gilr_lstm_forward.1} parent=81 // pred_fallthru
          _
        %s1467 = sand.u32 %s196, 1
        %s1468 = sand.u32 %s196, 1
        %s1469 = smul.addr %s1468, 64
        %s1470 = scalar_lea.vmem [#allocation8], %s1469
        %p1471 = scmp.lt.s32.totalorder %s24, 1
        %s1472 = scalar_select %p1471, %s24, 1
        %s1473 = smul.addr %s1472, 2
        %s1474 = smul.addr %s1473, 8
        %s1475 = scalar_lea.vmem %s8, %s1474
        // Predicated region
        $region95: #{gilr_lstm_forward.1} parent=81 // pred_check
          %p1476 = pneg %p206
        $region96: #{gilr_lstm_forward.1} parent=81 // pred_check_branch
          %1478 = sbr.rel (%p1476) target = $region98
        $region97: #{gilr_lstm_forward.1} parent=81 // pred_region
          %s1479 = smul.u32 8, %s25
          %s1480 = smul.addr %s1479, 2
          %s1481 = sadd.s32 %s24, %s1480
          %s1482 = smul.addr %s1481, 8
          %s1483 = scalar_lea.vmem %s7, %s1482
          // Predicated region
          $region99: #{gilr_lstm_forward.1} parent=97 // pred_check
            _
          $region100: #{gilr_lstm_forward.1} parent=97 // pred_check_branch
            %1485 = sbr.rel (0) target = $region102
          $region101: #{gilr_lstm_forward.1} parent=97 // pred_region
            // Predicated region
            $region103: #{gilr_lstm_forward.1} parent=101 // pred_check
              _
            $region104: #{gilr_lstm_forward.1} parent=101 // pred_check_branch
              %1487 = sbr.rel (0) target = $region106
            $region105: #{gilr_lstm_forward.1} parent=101 // pred_region
              // Predicated region
              $region118: #{gilr_lstm_forward.1} parent=105 // pred_check
                _
              $region119: #{gilr_lstm_forward.1} parent=105 // pred_check_branch
                %1516 = sbr.rel (0) target = $region121
              $region120: #{gilr_lstm_forward.1} parent=105 // pred_region
                loop: start=0, step=1, limit=1
                $region122: #{gilr_lstm_forward.1} parent=120 // loop_pre_header
                  _
                $region123: #{gilr_lstm_forward.1} parent=120 // loop_header
                  %s1518 = sphi 0, %s1522
                  %p1519 = scmp.ge.s32.totalorder %s1518, 1
                  %s1523 = sphi %s1470, %s1470
                  %s1524 = sphi %s1483, %s1483
                $region124: #{gilr_lstm_forward.1} parent=120 // loop_header_branch
                  %1521 = sbr.rel (%p1519) target = $region128
                $region125: #{gilr_lstm_forward.1} parent=120 // loop_body
                  %v1525 = vld [vmem:[%s1523] sm:$0xff]
                  %1526 = vst [vmem:[%s1524] sm:$0xff] %v1525
                  %v1527 = vld [vmem:[%s1523 + $0x8] sm:$0xff]
                  %1528 = vst [vmem:[%s1524 + $0x10] sm:$0xff] %v1527
                  %v1529 = vld [vmem:[%s1523 + $0x10] sm:$0xff]
                  %1530 = vst [vmem:[%s1524 + $0x20] sm:$0xff] %v1529
                  %v1531 = vld [vmem:[%s1523 + $0x18] sm:$0xff]
                  %1532 = vst [vmem:[%s1524 + $0x30] sm:$0xff] %v1531
                  %v1533 = vld [vmem:[%s1523 + $0x20] sm:$0xff]
                  %1534 = vst [vmem:[%s1524 + $0x40] sm:$0xff] %v1533
                  %v1535 = vld [vmem:[%s1523 + $0x28] sm:$0xff]
                  %1536 = vst [vmem:[%s1524 + $0x50] sm:$0xff] %v1535
                  %v1537 = vld [vmem:[%s1523 + $0x30] sm:$0xff]
                  %1538 = vst [vmem:[%s1524 + $0x60] sm:$0xff] %v1537
                  %v1539 = vld [vmem:[%s1523 + $0x38] sm:$0xff]
                  %1540 = vst [vmem:[%s1524 + $0x70] sm:$0xff] %v1539
                $region126: #{gilr_lstm_forward.1} parent=120 // loop_footer
                  %s1522 = sadd.s32 1, %s1518
                $region127: #{gilr_lstm_forward.1} parent=120 // loop_footer_branch
                  %1517 = sbr.rel target = $region123
                $region128: #{gilr_lstm_forward.1} parent=120 // loop_exit
                  _
              $region121: #{gilr_lstm_forward.1} parent=105 // pred_fallthru
                _
              // Predicated region
              $region129: #{gilr_lstm_forward.1} parent=105 // pred_check
                _
              $region130: #{gilr_lstm_forward.1} parent=105 // pred_check_branch
                %1542 = sbr.rel target = $region132
              $region131: #{gilr_lstm_forward.1} parent=105 // pred_region
                _
              $region132: #{gilr_lstm_forward.1} parent=105 // pred_fallthru
                _
            $region106: #{gilr_lstm_forward.1} parent=101 // pred_fallthru
              _
            // Predicated region
            $region107: #{gilr_lstm_forward.1} parent=101 // pred_check
              _
            $region108: #{gilr_lstm_forward.1} parent=101 // pred_check_branch
              %1489 = sbr.rel target = $region110
            $region109: #{gilr_lstm_forward.1} parent=101 // pred_region
              loop: start=0, step=1, limit=1
              $region111: #{gilr_lstm_forward.1} parent=109 // loop_pre_header
                _
              $region112: #{gilr_lstm_forward.1} parent=109 // loop_header
                %s1492 = sphi 0, %s1496
                %p1493 = scmp.ge.s32.totalorder %s1492, 1
                %s1497 = sphi %s1470, %s1470
                %s1498 = sphi %s1483, %s1483
              $region113: #{gilr_lstm_forward.1} parent=109 // loop_header_branch
                %1495 = sbr.rel (%p1493) target = $region117
              $region114: #{gilr_lstm_forward.1} parent=109 // loop_body
                %v1499 = vld [vmem:[%s1497] sm:$0xff]
                %1500 = vst [vmem:[%s1498] sm:$0xff] %v1499
                %v1501 = vld [vmem:[%s1497 + $0x8] sm:$0xff]
                %1502 = vst [vmem:[%s1498 + $0x10] sm:$0xff] %v1501
                %v1503 = vld [vmem:[%s1497 + $0x10] sm:$0xff]
                %1504 = vst [vmem:[%s1498 + $0x20] sm:$0xff] %v1503
                %v1505 = vld [vmem:[%s1497 + $0x18] sm:$0xff]
                %1506 = vst [vmem:[%s1498 + $0x30] sm:$0xff] %v1505
                %v1507 = vld [vmem:[%s1497 + $0x20] sm:$0xff]
                %1508 = vst [vmem:[%s1498 + $0x40] sm:$0xff] %v1507
                %v1509 = vld [vmem:[%s1497 + $0x28] sm:$0xff]
                %1510 = vst [vmem:[%s1498 + $0x50] sm:$0xff] %v1509
                %v1511 = vld [vmem:[%s1497 + $0x30] sm:$0xff]
                %1512 = vst [vmem:[%s1498 + $0x60] sm:$0xff] %v1511
                %v1513 = vld [vmem:[%s1497 + $0x38] sm:$0xff]
                %1514 = vst [vmem:[%s1498 + $0x70] sm:$0xff] %v1513
              $region115: #{gilr_lstm_forward.1} parent=109 // loop_footer
                %s1496 = sadd.s32 1, %s1492
              $region116: #{gilr_lstm_forward.1} parent=109 // loop_footer_branch
                %1491 = sbr.rel target = $region112
              $region117: #{gilr_lstm_forward.1} parent=109 // loop_exit
                _
            $region110: #{gilr_lstm_forward.1} parent=101 // pred_fallthru
              _
          $region102: #{gilr_lstm_forward.1} parent=97 // pred_fallthru
            _
          %1543 = vnop
        $region98: #{gilr_lstm_forward.1} parent=81 // pred_fallthru
          _
        // Predicated region
        $region133: #{gilr_lstm_forward.1} parent=81 // pred_check
          %p1544 = pneg %p232
        $region134: #{gilr_lstm_forward.1} parent=81 // pred_check_branch
          %1546 = sbr.rel (%p1544) target = $region136
        $region135: #{gilr_lstm_forward.1} parent=81 // pred_region
          _
        $region136: #{gilr_lstm_forward.1} parent=81 // pred_fallthru
          _
      $region82: #{gilr_lstm_forward.1} parent=5 // pred_fallthru
        _
      %p1547 = scmp.le.s32.totalorder 2, %s15
      // Predicated region
      $region137: #{gilr_lstm_forward.1} parent=5 // pred_check
        %p1548 = pneg %p1547
      $region138: #{gilr_lstm_forward.1} parent=5 // pred_check_branch
        %1550 = sbr.rel (%p1548) target = $region140
      $region139: #{gilr_lstm_forward.1} parent=5 // pred_region
        %s1551 = ssub.s32 %s15, 2
        // Predicated region
        $region141: #{gilr_lstm_forward.1} parent=139 // pred_check
          %p1552 = pneg %p212
        $region142: #{gilr_lstm_forward.1} parent=139 // pred_check_branch
          %1554 = sbr.rel (%p1552) target = $region144
        $region143: #{gilr_lstm_forward.1} parent=139 // pred_region
          %s1555 = sand.u32 %s197, 1
          %s1556 = sand.u32 %s197, 1
          %s1557 = smul.addr %s1556, 64
          %s1558 = scalar_lea.vmem [#allocation8], %s1557
        $region144: #{gilr_lstm_forward.1} parent=139 // pred_fallthru
          _
        // Predicated region
        $region145: #{gilr_lstm_forward.1} parent=139 // pred_check
          %p1559 = pneg %p238
        $region146: #{gilr_lstm_forward.1} parent=139 // pred_check_branch
          %1561 = sbr.rel (%p1559) target = $region148
        $region147: #{gilr_lstm_forward.1} parent=139 // pred_region
          %p1562 = scmp.lt.s32.totalorder %s26, 1
          %s1563 = scalar_select %p1562, %s26, 1
          %s1564 = smul.addr %s1563, 2
          %s1565 = smul.addr %s1564, 8
          %s1566 = scalar_lea.vmem %s8, %s1565
        $region148: #{gilr_lstm_forward.1} parent=139 // pred_fallthru
          _
      $region140: #{gilr_lstm_forward.1} parent=5 // pred_fallthru
        _
    $region6: #{gilr_lstm_forward.1} parent=1 // loop_footer
      %s19 = sadd.s32 1, %s15
    $region7: #{gilr_lstm_forward.1} parent=1 // loop_footer_branch
      %14 = sbr.rel target = $region3
    $region8: #{gilr_lstm_forward.1} parent=1 // loop_exit
      _

</llo_original>
